<compile_context>
chip_gen: v6e
topology: v6e:2x2x1
jax: 0.10.0
libtpu: 0.0.40
codegen_flags: <defaults>
</compile_context>

<pallas_src>
import jax
import jax.numpy as jnp
from jax.experimental import pallas as pl
from jax.experimental.pallas import tpu as pltpu


def make_kernel(L, H, n_mlp, unroll):
    """Kernel closure for fixed static shapes.

    ref layout (per batch tile of tile_N rows):
      gx      (L, tile_N, 4H)  precomputed ReLU(forcing@W_in+b_in)@W_ih + b_lstm,
                               gate order [i, f, o, g]
      statics (tile_N, F-4)
      w_hh    (H, 4H)          gate order [i, f, o, g]
      w_out   (H, OL), b_out (1, OL)
      w0_top  (OL, hid0), w0_bot (F-4, hid0), b0 (1, hid0)
      [w_i, b_i] for the remaining n_mlp-1 MLP layers
      out     (tile_N, outFC)
    """

    def kernel(*refs):
        (gx_ref, statics_ref, w_hh_ref, w_out_ref, b_out_ref,
         w0_top_ref, w0_bot_ref, b0_ref) = refs[:8]
        rest_refs = refs[8:8 + 2 * (n_mlp - 1)]
        out_ref = refs[8 + 2 * (n_mlp - 1)]

        tile_n = gx_ref.shape[1]
        w_hh = w_hh_ref[...]                       # (H, 4H), resident across steps

        # ---- LSTM recurrence: one (tile_n,H)@(H,4H) matmul + fused gate math ----
        def step(t, carry):
            h, c = carry
            gates = gx_ref[t] + jnp.dot(h, w_hh,
                                        preferred_element_type=jnp.float32)
            sig = jax.nn.sigmoid(gates[:, :3 * H])      # [i | f | o] in one pass
            g_g = jnp.tanh(gates[:, 3 * H:])            # g
            i_g = sig[:, 0 * H:1 * H]
            f_g = sig[:, 1 * H:2 * H]
            o_g = sig[:, 2 * H:3 * H]
            c_new = f_g * c + i_g * g_g
            h_new = o_g * jnp.tanh(c_new)
            return (h_new, c_new)

        h0 = jnp.zeros((tile_n, H), jnp.float32)
        c0 = jnp.zeros((tile_n, H), jnp.float32)
        h_last, _ = jax.lax.fori_loop(0, L, step, (h0, c0), unroll=unroll)

        # ---- fcOut: Linear(H, OL) + ReLU (only last timestep is consumed) ----
        x0 = jnp.maximum(
            jnp.dot(h_last, w_out_ref[...], preferred_element_type=jnp.float32)
            + b_out_ref[...], 0.0)                                # (tile_n, OL)

        # ---- first MLP layer: concat(x0, statics) folded into split weights ----
        # TODO(synk): nn.Dropout is stochastic in train mode; identity here (eval).
        h_mlp = (jnp.dot(x0, w0_top_ref[...], preferred_element_type=jnp.float32)
                 + jnp.dot(statics_ref[...], w0_bot_ref[...],
                           preferred_element_type=jnp.float32)
                 + b0_ref[...])
        if n_mlp > 1:
            h_mlp = jnp.maximum(h_mlp, 0.0)

        # ---- remaining MLP layers ----
        for li in range(n_mlp - 1):
            w = rest_refs[2 * li][...]
            b = rest_refs[2 * li + 1][...]
            h_mlp = jnp.dot(h_mlp, w, preferred_element_type=jnp.float32) + b
            if li < n_mlp - 2:
                h_mlp = jnp.maximum(h_mlp, 0.0)

        out_ref[...] = h_mlp                                      # (tile_n, outFC)

    return kernel


def sta_paras_lstm_mlp_forward(x, params, *, max_tile_n=128):
    N, L, F = x.shape
    H = params["w_ih"].shape[0]
    OL = params["w_out"].shape[1]
    mlp_ws, mlp_bs = params["mlp_w"], params["mlp_b"]
    n_mlp = len(mlp_ws)
    outFC = mlp_ws[-1].shape[1]
    n_static = F - 4

    # ---- batch tiling: tile_n rows per grid step (sublane-aligned) ----------
    tile_n = min(((N + 7) // 8) * 8, max_tile_n)
    tile_n = ((tile_n + 7) // 8) * 8
    N_pad = ((N + tile_n - 1) // tile_n) * tile_n
    num_tiles = N_pad // tile_n

    # ---- gate-order permutation [i,f,g,o] -> [i,f,o,g] (fused nonlinearities) --
    perm = jnp.concatenate([jnp.arange(0, 2 * H),
                            jnp.arange(3 * H, 4 * H),
                            jnp.arange(2 * H, 3 * H)])
    w_ih = params["w_ih"][:, perm]
    w_hh = params["w_hh"][:, perm]
    b_lstm = params["b_lstm"][:, perm]

    # ---- hoisted fcIn + LSTM input projection (wrapper-side XLA matmuls) ----
    # gx is lane-dense (last dim 4H=128) and time-major so the kernel's
    # per-step slice gx[t] is a contiguous (tile_n, 4H) block.
    forcing = x[:, :, :3]                                          # (N, L, 3)
    xp = jnp.maximum(
        jnp.einsum("nlf,fh->nlh", forcing, params["w_in"]) + params["b_in"], 0.0)
    gx = jnp.einsum("nlh,hg->nlg", xp, w_ih) + b_lstm              # (N, L, 4H)
    gx = jnp.transpose(gx, (1, 0, 2))                              # (L, N, 4H)
    gx = jnp.pad(gx, ((0, 0), (0, N_pad - N), (0, 0)))
    # TODO(synk): for production-scale L (hundreds), store gx in bf16 (cast to
    # f32 at the per-step load) or chunk over time to cut the per-tile VMEM.

    statics = jnp.pad(x[:, L - 1, 4:], ((0, N_pad - N), (0, 0)))   # (N_pad, F-4)

    # Split the first MLP weight so the kernel never concatenates.
    w0 = mlp_ws[0]
    w0_top, w0_bot = w0[:OL], w0[OL:]
    b0 = mlp_bs[0]

    flat_inputs = [gx, statics, w_hh,
                   params["w_out"], params["b_out"],
                   w0_top, w0_bot, b0]
    for w, b in zip(mlp_ws[1:], mlp_bs[1:]):
        flat_inputs += [w, b]

    in_specs = [
        pl.BlockSpec((L, tile_n, 4 * H), lambda i: (0, i, 0)),     # gx, per batch tile
        pl.BlockSpec((tile_n, n_static), lambda i: (i, 0)),        # statics
    ]
    for arr in flat_inputs[2:]:          # small 2-D weights / biases: resident
        in_specs.append(pl.BlockSpec(arr.shape, lambda i: (0, 0)))
    out_spec = pl.BlockSpec((tile_n, outFC), lambda i: (i, 0))

    # ---- explicit scoped-VMEM budget (double-buffered gx tile dominates) ----
    gx_tile_bytes = L * tile_n * 4 * H * 4
    weight_bytes = sum(int(a.size) * 4 for a in flat_inputs[2:])
    io_tile_bytes = tile_n * 128 * 4 * 2               # statics + out, lane-padded
    vmem_est = 2 * (gx_tile_bytes + io_tile_bytes) + 2 * weight_bytes + (2 << 20)
    vmem_limit = int(min(max(vmem_est, 16 * 1024 * 1024), 48 * 1024 * 1024))

    # Cap the recurrence unroll for long sequences; full unroll for small L.
    unroll = True if L <= 16 else 8

    kernel = make_kernel(L, H, n_mlp, unroll)
    out = pl.pallas_call(
        kernel,
        out_shape=jax.ShapeDtypeStruct((N_pad, outFC), jnp.float32),
        grid=(num_tiles,),
        in_specs=in_specs,
        out_specs=out_spec,
        compiler_params=pltpu.CompilerParams(
            dimension_semantics=("parallel",),
            vmem_limit_bytes=vmem_limit),
    )(*flat_inputs)
    return out[:N]


def reference_forward(x, params):
    """Pure-JAX reference reproducing the PyTorch forward (eval mode)."""
    N, L, F = x.shape
    H = params["w_ih"].shape[0]
    forcing = x[:, :, :3]
    xp = jnp.maximum(jnp.einsum("nlf,fh->nlh", forcing, params["w_in"])
                     + params["b_in"], 0.0)
    h = jnp.zeros((N, H), jnp.float32)
    c = jnp.zeros((N, H), jnp.float32)
    for t in range(L):
        gates = xp[:, t, :] @ params["w_ih"] + h @ params["w_hh"] + params["b_lstm"]
        i = jax.nn.sigmoid(gates[:, :H])
        f = jax.nn.sigmoid(gates[:, H:2 * H])
        g = jnp.tanh(gates[:, 2 * H:3 * H])
        o = jax.nn.sigmoid(gates[:, 3 * H:])
        c = f * c + i * g
        h = o * jnp.tanh(c)
    x0 = jnp.maximum(h @ params["w_out"] + params["b_out"], 0.0)
    h_mlp = jnp.concatenate([x0, x[:, -1, 4:]], axis=-1)
    n_mlp = len(params["mlp_w"])
    for li, (w, b) in enumerate(zip(params["mlp_w"], params["mlp_b"])):
        h_mlp = h_mlp @ w + b
        if li < n_mlp - 1:
            h_mlp = jnp.maximum(h_mlp, 0.0)
    return h_mlp


def init_params(key, inLSTM, H, OL, inFC, hidFC, outFC):
    ks = jax.random.split(key, 16)
    s = 0.1
    p = {
        "w_in": s * jax.random.normal(ks[0], (inLSTM, H), jnp.float32),
        "b_in": s * jax.random.normal(ks[1], (1, H), jnp.float32),
        "w_ih": s * jax.random.normal(ks[2], (H, 4 * H), jnp.float32),
        "w_hh": s * jax.random.normal(ks[3], (H, 4 * H), jnp.float32),
        # b_lstm == b_ih + b_hh (PyTorch keeps them separate; the sum is equivalent)
        "b_lstm": s * (jax.random.normal(ks[4], (1, 4 * H), jnp.float32)
                       + jax.random.normal(ks[5], (1, 4 * H), jnp.float32)),
        "w_out": s * jax.random.normal(ks[6], (H, OL), jnp.float32),
        "b_out": s * jax.random.normal(ks[7], (1, OL), jnp.float32),
    }
    mlp_w, mlp_b = [], []
    in_feat = inFC
    ki = 8
    for out_feat in list(hidFC) + [outFC]:
        mlp_w.append(s * jax.random.normal(ks[ki], (in_feat, out_feat), jnp.float32))
        mlp_b.append(s * jax.random.normal(ks[ki + 1], (1, out_feat), jnp.float32))
        in_feat = out_feat
        ki += 2
    p["mlp_w"], p["mlp_b"] = mlp_w, mlp_b
    return p


if __name__ == "__main__":
    # Small shapes consistent with the module:
    #   N=2, L=8, F=8  -> 3 forcing cols, col 3 unused, 4 static attrs
    #   inLSTM=3, hidLSTM=32 (4H=128 lanes), outLSTM=16,
    #   inFC = 16 + (8-4) = 20, hidFC=[32], outFC=4
    N, L, F = 2, 8, 8
    inLSTM, H, OL = 3, 32, 16
    hidFC, outFC = [32], 4
    inFC = OL + (F - 4)

    key = jax.random.PRNGKey(0)
    kx, kattr, kp = jax.random.split(key, 3)

    x = jax.random.normal(kx, (N, L, F), jnp.float32)
    # static attributes are constant along L (as the module docstring states)
    attrs = jax.random.normal(kattr, (N, F - 3), jnp.float32)
    x = x.at[:, :, 3:].set(attrs[:, None, :])

    params = init_params(kp, inLSTM, H, OL, inFC, hidFC, outFC)

    out = sta_paras_lstm_mlp_forward(x, params)
    out = jax.block_until_ready(out)

    ref = reference_forward(x, params)
    assert out.shape == (N, outFC)
    assert jnp.allclose(out, ref, atol=2e-3, rtol=2e-3), (out, ref)

    print("KERNEL_OK")
</pallas_src>

<mosaic_0001>
module attributes {stable_mosaic.version = 11 : i64} {
  func.func @kernel(%arg0: i32, %arg1: memref<8x8x128xf32, #tpu.memory_space<vmem>>, %arg2: memref<8x4xf32, #tpu.memory_space<vmem>>, %arg3: memref<32x128xf32, #tpu.memory_space<vmem>>, %arg4: memref<32x16xf32, #tpu.memory_space<vmem>>, %arg5: memref<1x16xf32, #tpu.memory_space<vmem>>, %arg6: memref<16x32xf32, #tpu.memory_space<vmem>>, %arg7: memref<4x32xf32, #tpu.memory_space<vmem>>, %arg8: memref<1x32xf32, #tpu.memory_space<vmem>>, %arg9: memref<32x4xf32, #tpu.memory_space<vmem>>, %arg10: memref<1x4xf32, #tpu.memory_space<vmem>>, %arg11: memref<8x4xf32, #tpu.memory_space<vmem>>) attributes {dimension_semantics = [#tpu.dimension_semantics<parallel>], iteration_bounds = array<i64: 1>, scalar_prefetch = 0 : i64, scratch_operands = 0 : i64, tpu.core_type = #tpu.core_type<tc>, window_params = [{transform_indices = @transform_0, window_bounds = array<i64: 8, 8, 128>}, {transform_indices = @transform_1, window_bounds = array<i64: 8, 4>}, {pipeline_mode = #tpu.pipeline_mode<synchronous>, transform_indices = @transform_2, window_bounds = array<i64: 32, 128>}, {pipeline_mode = #tpu.pipeline_mode<synchronous>, transform_indices = @transform_3, window_bounds = array<i64: 32, 16>}, {pipeline_mode = #tpu.pipeline_mode<synchronous>, transform_indices = @transform_4, window_bounds = array<i64: 1, 16>}, {pipeline_mode = #tpu.pipeline_mode<synchronous>, transform_indices = @transform_5, window_bounds = array<i64: 16, 32>}, {pipeline_mode = #tpu.pipeline_mode<synchronous>, transform_indices = @transform_6, window_bounds = array<i64: 4, 32>}, {pipeline_mode = #tpu.pipeline_mode<synchronous>, transform_indices = @transform_7, window_bounds = array<i64: 1, 32>}, {pipeline_mode = #tpu.pipeline_mode<synchronous>, transform_indices = @transform_8, window_bounds = array<i64: 32, 4>}, {pipeline_mode = #tpu.pipeline_mode<synchronous>, transform_indices = @transform_9, window_bounds = array<i64: 1, 4>}, {transform_indices = @transform_10, window_bounds = array<i64: 8, 4>}]} {
    %c0 = arith.constant 0 : index
    %c0_0 = arith.constant 0 : index
    %0 = vector.load %arg3[%c0, %c0_0] : memref<32x128xf32, #tpu.memory_space<vmem>>, vector<32x128xf32>
    %cst = arith.constant 0.000000e+00 : f32
    %1 = vector.broadcast %cst : f32 to vector<8x32xf32>
    %cst_1 = arith.constant 0.000000e+00 : f32
    %2 = vector.broadcast %cst_1 : f32 to vector<8x32xf32>
    %c0_i32 = arith.constant 0 : i32
    %3 = arith.index_cast %c0_i32 : i32 to index
    %c0_2 = arith.constant 0 : index
    %c0_3 = arith.constant 0 : index
    %4 = vector.load %arg1[%3, %c0_2, %c0_3] : memref<8x8x128xf32, #tpu.memory_space<vmem>>, vector<1x8x128xf32>
    %5 = vector.shape_cast %4 : vector<1x8x128xf32> to vector<8x128xf32>
    %cst_4 = arith.constant dense<0.000000e+00> : vector<8x128xf32>
    %6 = tpu.matmul %1, %0, %cst_4 {dimension_numbers = #tpu.dot_dimension_numbers<[1], [0], [0], [1], [0, 0, 1, 1], [], []>} : vector<8x32xf32>, vector<32x128xf32>, vector<8x128xf32> -> vector<8x128xf32>
    %7 = arith.addf %5, %6 : vector<8x128xf32>
    %8 = vector.extract_strided_slice %7 {offsets = [0, 0], sizes = [8, 96], strides = [1, 1]} : vector<8x128xf32> to vector<8x96xf32>
    %9 = arith.negf %8 : vector<8x96xf32>
    %10 = math.exp %9 : vector<8x96xf32>
    %cst_5 = arith.constant 1.000000e+00 : f32
    %11 = vector.broadcast %cst_5 : f32 to vector<8x96xf32>
    %12 = arith.addf %11, %10 : vector<8x96xf32>
    %13 = arith.divf %11, %12 : vector<8x96xf32>
    %14 = vector.extract_strided_slice %7 {offsets = [0, 96], sizes = [8, 32], strides = [1, 1]} : vector<8x128xf32> to vector<8x32xf32>
    %15 = math.tanh %14 : vector<8x32xf32>
    %16 = vector.extract_strided_slice %13 {offsets = [0, 0], sizes = [8, 32], strides = [1, 1]} : vector<8x96xf32> to vector<8x32xf32>
    %17 = vector.extract_strided_slice %13 {offsets = [0, 32], sizes = [8, 32], strides = [1, 1]} : vector<8x96xf32> to vector<8x32xf32>
    %18 = vector.extract_strided_slice %13 {offsets = [0, 64], sizes = [8, 32], strides = [1, 1]} : vector<8x96xf32> to vector<8x32xf32>
    %19 = arith.mulf %17, %2 : vector<8x32xf32>
    %20 = arith.mulf %16, %15 : vector<8x32xf32>
    %21 = arith.addf %19, %20 : vector<8x32xf32>
    %22 = math.tanh %21 : vector<8x32xf32>
    %23 = arith.mulf %18, %22 : vector<8x32xf32>
    %c1_i32 = arith.constant 1 : i32
    %24 = arith.index_cast %c1_i32 : i32 to index
    %c0_6 = arith.constant 0 : index
    %c0_7 = arith.constant 0 : index
    %25 = vector.load %arg1[%24, %c0_6, %c0_7] : memref<8x8x128xf32, #tpu.memory_space<vmem>>, vector<1x8x128xf32>
    %26 = vector.shape_cast %25 : vector<1x8x128xf32> to vector<8x128xf32>
    %cst_8 = arith.constant dense<0.000000e+00> : vector<8x128xf32>
    %27 = tpu.matmul %23, %0, %cst_8 {dimension_numbers = #tpu.dot_dimension_numbers<[1], [0], [0], [1], [0, 0, 1, 1], [], []>} : vector<8x32xf32>, vector<32x128xf32>, vector<8x128xf32> -> vector<8x128xf32>
    %28 = arith.addf %26, %27 : vector<8x128xf32>
    %29 = vector.extract_strided_slice %28 {offsets = [0, 0], sizes = [8, 96], strides = [1, 1]} : vector<8x128xf32> to vector<8x96xf32>
    %30 = arith.negf %29 : vector<8x96xf32>
    %31 = math.exp %30 : vector<8x96xf32>
    %cst_9 = arith.constant 1.000000e+00 : f32
    %32 = vector.broadcast %cst_9 : f32 to vector<8x96xf32>
    %33 = arith.addf %32, %31 : vector<8x96xf32>
    %34 = arith.divf %32, %33 : vector<8x96xf32>
    %35 = vector.extract_strided_slice %28 {offsets = [0, 96], sizes = [8, 32], strides = [1, 1]} : vector<8x128xf32> to vector<8x32xf32>
    %36 = math.tanh %35 : vector<8x32xf32>
    %37 = vector.extract_strided_slice %34 {offsets = [0, 0], sizes = [8, 32], strides = [1, 1]} : vector<8x96xf32> to vector<8x32xf32>
    %38 = vector.extract_strided_slice %34 {offsets = [0, 32], sizes = [8, 32], strides = [1, 1]} : vector<8x96xf32> to vector<8x32xf32>
    %39 = vector.extract_strided_slice %34 {offsets = [0, 64], sizes = [8, 32], strides = [1, 1]} : vector<8x96xf32> to vector<8x32xf32>
    %40 = arith.mulf %38, %21 : vector<8x32xf32>
    %41 = arith.mulf %37, %36 : vector<8x32xf32>
    %42 = arith.addf %40, %41 : vector<8x32xf32>
    %43 = math.tanh %42 : vector<8x32xf32>
    %44 = arith.mulf %39, %43 : vector<8x32xf32>
    %c2_i32 = arith.constant 2 : i32
    %45 = arith.index_cast %c2_i32 : i32 to index
    %c0_10 = arith.constant 0 : index
    %c0_11 = arith.constant 0 : index
    %46 = vector.load %arg1[%45, %c0_10, %c0_11] : memref<8x8x128xf32, #tpu.memory_space<vmem>>, vector<1x8x128xf32>
    %47 = vector.shape_cast %46 : vector<1x8x128xf32> to vector<8x128xf32>
    %cst_12 = arith.constant dense<0.000000e+00> : vector<8x128xf32>
    %48 = tpu.matmul %44, %0, %cst_12 {dimension_numbers = #tpu.dot_dimension_numbers<[1], [0], [0], [1], [0, 0, 1, 1], [], []>} : vector<8x32xf32>, vector<32x128xf32>, vector<8x128xf32> -> vector<8x128xf32>
    %49 = arith.addf %47, %48 : vector<8x128xf32>
    %50 = vector.extract_strided_slice %49 {offsets = [0, 0], sizes = [8, 96], strides = [1, 1]} : vector<8x128xf32> to vector<8x96xf32>
    %51 = arith.negf %50 : vector<8x96xf32>
    %52 = math.exp %51 : vector<8x96xf32>
    %cst_13 = arith.constant 1.000000e+00 : f32
    %53 = vector.broadcast %cst_13 : f32 to vector<8x96xf32>
    %54 = arith.addf %53, %52 : vector<8x96xf32>
    %55 = arith.divf %53, %54 : vector<8x96xf32>
    %56 = vector.extract_strided_slice %49 {offsets = [0, 96], sizes = [8, 32], strides = [1, 1]} : vector<8x128xf32> to vector<8x32xf32>
    %57 = math.tanh %56 : vector<8x32xf32>
    %58 = vector.extract_strided_slice %55 {offsets = [0, 0], sizes = [8, 32], strides = [1, 1]} : vector<8x96xf32> to vector<8x32xf32>
    %59 = vector.extract_strided_slice %55 {offsets = [0, 32], sizes = [8, 32], strides = [1, 1]} : vector<8x96xf32> to vector<8x32xf32>
    %60 = vector.extract_strided_slice %55 {offsets = [0, 64], sizes = [8, 32], strides = [1, 1]} : vector<8x96xf32> to vector<8x32xf32>
    %61 = arith.mulf %59, %42 : vector<8x32xf32>
    %62 = arith.mulf %58, %57 : vector<8x32xf32>
    %63 = arith.addf %61, %62 : vector<8x32xf32>
    %64 = math.tanh %63 : vector<8x32xf32>
    %65 = arith.mulf %60, %64 : vector<8x32xf32>
    %c3_i32 = arith.constant 3 : i32
    %66 = arith.index_cast %c3_i32 : i32 to index
    %c0_14 = arith.constant 0 : index
    %c0_15 = arith.constant 0 : index
    %67 = vector.load %arg1[%66, %c0_14, %c0_15] : memref<8x8x128xf32, #tpu.memory_space<vmem>>, vector<1x8x128xf32>
    %68 = vector.shape_cast %67 : vector<1x8x128xf32> to vector<8x128xf32>
    %cst_16 = arith.constant dense<0.000000e+00> : vector<8x128xf32>
    %69 = tpu.matmul %65, %0, %cst_16 {dimension_numbers = #tpu.dot_dimension_numbers<[1], [0], [0], [1], [0, 0, 1, 1], [], []>} : vector<8x32xf32>, vector<32x128xf32>, vector<8x128xf32> -> vector<8x128xf32>
    %70 = arith.addf %68, %69 : vector<8x128xf32>
    %71 = vector.extract_strided_slice %70 {offsets = [0, 0], sizes = [8, 96], strides = [1, 1]} : vector<8x128xf32> to vector<8x96xf32>
    %72 = arith.negf %71 : vector<8x96xf32>
    %73 = math.exp %72 : vector<8x96xf32>
    %cst_17 = arith.constant 1.000000e+00 : f32
    %74 = vector.broadcast %cst_17 : f32 to vector<8x96xf32>
    %75 = arith.addf %74, %73 : vector<8x96xf32>
    %76 = arith.divf %74, %75 : vector<8x96xf32>
    %77 = vector.extract_strided_slice %70 {offsets = [0, 96], sizes = [8, 32], strides = [1, 1]} : vector<8x128xf32> to vector<8x32xf32>
    %78 = math.tanh %77 : vector<8x32xf32>
    %79 = vector.extract_strided_slice %76 {offsets = [0, 0], sizes = [8, 32], strides = [1, 1]} : vector<8x96xf32> to vector<8x32xf32>
    %80 = vector.extract_strided_slice %76 {offsets = [0, 32], sizes = [8, 32], strides = [1, 1]} : vector<8x96xf32> to vector<8x32xf32>
    %81 = vector.extract_strided_slice %76 {offsets = [0, 64], sizes = [8, 32], strides = [1, 1]} : vector<8x96xf32> to vector<8x32xf32>
    %82 = arith.mulf %80, %63 : vector<8x32xf32>
    %83 = arith.mulf %79, %78 : vector<8x32xf32>
    %84 = arith.addf %82, %83 : vector<8x32xf32>
    %85 = math.tanh %84 : vector<8x32xf32>
    %86 = arith.mulf %81, %85 : vector<8x32xf32>
    %c4_i32 = arith.constant 4 : i32
    %87 = arith.index_cast %c4_i32 : i32 to index
    %c0_18 = arith.constant 0 : index
    %c0_19 = arith.constant 0 : index
    %88 = vector.load %arg1[%87, %c0_18, %c0_19] : memref<8x8x128xf32, #tpu.memory_space<vmem>>, vector<1x8x128xf32>
    %89 = vector.shape_cast %88 : vector<1x8x128xf32> to vector<8x128xf32>
    %cst_20 = arith.constant dense<0.000000e+00> : vector<8x128xf32>
    %90 = tpu.matmul %86, %0, %cst_20 {dimension_numbers = #tpu.dot_dimension_numbers<[1], [0], [0], [1], [0, 0, 1, 1], [], []>} : vector<8x32xf32>, vector<32x128xf32>, vector<8x128xf32> -> vector<8x128xf32>
    %91 = arith.addf %89, %90 : vector<8x128xf32>
    %92 = vector.extract_strided_slice %91 {offsets = [0, 0], sizes = [8, 96], strides = [1, 1]} : vector<8x128xf32> to vector<8x96xf32>
    %93 = arith.negf %92 : vector<8x96xf32>
    %94 = math.exp %93 : vector<8x96xf32>
    %cst_21 = arith.constant 1.000000e+00 : f32
    %95 = vector.broadcast %cst_21 : f32 to vector<8x96xf32>
    %96 = arith.addf %95, %94 : vector<8x96xf32>
    %97 = arith.divf %95, %96 : vector<8x96xf32>
    %98 = vector.extract_strided_slice %91 {offsets = [0, 96], sizes = [8, 32], strides = [1, 1]} : vector<8x128xf32> to vector<8x32xf32>
    %99 = math.tanh %98 : vector<8x32xf32>
    %100 = vector.extract_strided_slice %97 {offsets = [0, 0], sizes = [8, 32], strides = [1, 1]} : vector<8x96xf32> to vector<8x32xf32>
    %101 = vector.extract_strided_slice %97 {offsets = [0, 32], sizes = [8, 32], strides = [1, 1]} : vector<8x96xf32> to vector<8x32xf32>
    %102 = vector.extract_strided_slice %97 {offsets = [0, 64], sizes = [8, 32], strides = [1, 1]} : vector<8x96xf32> to vector<8x32xf32>
    %103 = arith.mulf %101, %84 : vector<8x32xf32>
    %104 = arith.mulf %100, %99 : vector<8x32xf32>
    %105 = arith.addf %103, %104 : vector<8x32xf32>
    %106 = math.tanh %105 : vector<8x32xf32>
    %107 = arith.mulf %102, %106 : vector<8x32xf32>
    %c5_i32 = arith.constant 5 : i32
    %108 = arith.index_cast %c5_i32 : i32 to index
    %c0_22 = arith.constant 0 : index
    %c0_23 = arith.constant 0 : index
    %109 = vector.load %arg1[%108, %c0_22, %c0_23] : memref<8x8x128xf32, #tpu.memory_space<vmem>>, vector<1x8x128xf32>
    %110 = vector.shape_cast %109 : vector<1x8x128xf32> to vector<8x128xf32>
    %cst_24 = arith.constant dense<0.000000e+00> : vector<8x128xf32>
    %111 = tpu.matmul %107, %0, %cst_24 {dimension_numbers = #tpu.dot_dimension_numbers<[1], [0], [0], [1], [0, 0, 1, 1], [], []>} : vector<8x32xf32>, vector<32x128xf32>, vector<8x128xf32> -> vector<8x128xf32>
    %112 = arith.addf %110, %111 : vector<8x128xf32>
    %113 = vector.extract_strided_slice %112 {offsets = [0, 0], sizes = [8, 96], strides = [1, 1]} : vector<8x128xf32> to vector<8x96xf32>
    %114 = arith.negf %113 : vector<8x96xf32>
    %115 = math.exp %114 : vector<8x96xf32>
    %cst_25 = arith.constant 1.000000e+00 : f32
    %116 = vector.broadcast %cst_25 : f32 to vector<8x96xf32>
    %117 = arith.addf %116, %115 : vector<8x96xf32>
    %118 = arith.divf %116, %117 : vector<8x96xf32>
    %119 = vector.extract_strided_slice %112 {offsets = [0, 96], sizes = [8, 32], strides = [1, 1]} : vector<8x128xf32> to vector<8x32xf32>
    %120 = math.tanh %119 : vector<8x32xf32>
    %121 = vector.extract_strided_slice %118 {offsets = [0, 0], sizes = [8, 32], strides = [1, 1]} : vector<8x96xf32> to vector<8x32xf32>
    %122 = vector.extract_strided_slice %118 {offsets = [0, 32], sizes = [8, 32], strides = [1, 1]} : vector<8x96xf32> to vector<8x32xf32>
    %123 = vector.extract_strided_slice %118 {offsets = [0, 64], sizes = [8, 32], strides = [1, 1]} : vector<8x96xf32> to vector<8x32xf32>
    %124 = arith.mulf %122, %105 : vector<8x32xf32>
    %125 = arith.mulf %121, %120 : vector<8x32xf32>
    %126 = arith.addf %124, %125 : vector<8x32xf32>
    %127 = math.tanh %126 : vector<8x32xf32>
    %128 = arith.mulf %123, %127 : vector<8x32xf32>
    %c6_i32 = arith.constant 6 : i32
    %129 = arith.index_cast %c6_i32 : i32 to index
    %c0_26 = arith.constant 0 : index
    %c0_27 = arith.constant 0 : index
    %130 = vector.load %arg1[%129, %c0_26, %c0_27] : memref<8x8x128xf32, #tpu.memory_space<vmem>>, vector<1x8x128xf32>
    %131 = vector.shape_cast %130 : vector<1x8x128xf32> to vector<8x128xf32>
    %cst_28 = arith.constant dense<0.000000e+00> : vector<8x128xf32>
    %132 = tpu.matmul %128, %0, %cst_28 {dimension_numbers = #tpu.dot_dimension_numbers<[1], [0], [0], [1], [0, 0, 1, 1], [], []>} : vector<8x32xf32>, vector<32x128xf32>, vector<8x128xf32> -> vector<8x128xf32>
    %133 = arith.addf %131, %132 : vector<8x128xf32>
    %134 = vector.extract_strided_slice %133 {offsets = [0, 0], sizes = [8, 96], strides = [1, 1]} : vector<8x128xf32> to vector<8x96xf32>
    %135 = arith.negf %134 : vector<8x96xf32>
    %136 = math.exp %135 : vector<8x96xf32>
    %cst_29 = arith.constant 1.000000e+00 : f32
    %137 = vector.broadcast %cst_29 : f32 to vector<8x96xf32>
    %138 = arith.addf %137, %136 : vector<8x96xf32>
    %139 = arith.divf %137, %138 : vector<8x96xf32>
    %140 = vector.extract_strided_slice %133 {offsets = [0, 96], sizes = [8, 32], strides = [1, 1]} : vector<8x128xf32> to vector<8x32xf32>
    %141 = math.tanh %140 : vector<8x32xf32>
    %142 = vector.extract_strided_slice %139 {offsets = [0, 0], sizes = [8, 32], strides = [1, 1]} : vector<8x96xf32> to vector<8x32xf32>
    %143 = vector.extract_strided_slice %139 {offsets = [0, 32], sizes = [8, 32], strides = [1, 1]} : vector<8x96xf32> to vector<8x32xf32>
    %144 = vector.extract_strided_slice %139 {offsets = [0, 64], sizes = [8, 32], strides = [1, 1]} : vector<8x96xf32> to vector<8x32xf32>
    %145 = arith.mulf %143, %126 : vector<8x32xf32>
    %146 = arith.mulf %142, %141 : vector<8x32xf32>
    %147 = arith.addf %145, %146 : vector<8x32xf32>
    %148 = math.tanh %147 : vector<8x32xf32>
    %149 = arith.mulf %144, %148 : vector<8x32xf32>
    %c7_i32 = arith.constant 7 : i32
    %150 = arith.index_cast %c7_i32 : i32 to index
    %c0_30 = arith.constant 0 : index
    %c0_31 = arith.constant 0 : index
    %151 = vector.load %arg1[%150, %c0_30, %c0_31] : memref<8x8x128xf32, #tpu.memory_space<vmem>>, vector<1x8x128xf32>
    %152 = vector.shape_cast %151 : vector<1x8x128xf32> to vector<8x128xf32>
    %cst_32 = arith.constant dense<0.000000e+00> : vector<8x128xf32>
    %153 = tpu.matmul %149, %0, %cst_32 {dimension_numbers = #tpu.dot_dimension_numbers<[1], [0], [0], [1], [0, 0, 1, 1], [], []>} : vector<8x32xf32>, vector<32x128xf32>, vector<8x128xf32> -> vector<8x128xf32>
    %154 = arith.addf %152, %153 : vector<8x128xf32>
    %155 = vector.extract_strided_slice %154 {offsets = [0, 0], sizes = [8, 96], strides = [1, 1]} : vector<8x128xf32> to vector<8x96xf32>
    %156 = arith.negf %155 : vector<8x96xf32>
    %157 = math.exp %156 : vector<8x96xf32>
    %cst_33 = arith.constant 1.000000e+00 : f32
    %158 = vector.broadcast %cst_33 : f32 to vector<8x96xf32>
    %159 = arith.addf %158, %157 : vector<8x96xf32>
    %160 = arith.divf %158, %159 : vector<8x96xf32>
    %161 = vector.extract_strided_slice %154 {offsets = [0, 96], sizes = [8, 32], strides = [1, 1]} : vector<8x128xf32> to vector<8x32xf32>
    %162 = math.tanh %161 : vector<8x32xf32>
    %163 = vector.extract_strided_slice %160 {offsets = [0, 0], sizes = [8, 32], strides = [1, 1]} : vector<8x96xf32> to vector<8x32xf32>
    %164 = vector.extract_strided_slice %160 {offsets = [0, 32], sizes = [8, 32], strides = [1, 1]} : vector<8x96xf32> to vector<8x32xf32>
    %165 = vector.extract_strided_slice %160 {offsets = [0, 64], sizes = [8, 32], strides = [1, 1]} : vector<8x96xf32> to vector<8x32xf32>
    %166 = arith.mulf %164, %147 : vector<8x32xf32>
    %167 = arith.mulf %163, %162 : vector<8x32xf32>
    %168 = arith.addf %166, %167 : vector<8x32xf32>
    %169 = math.tanh %168 : vector<8x32xf32>
    %170 = arith.mulf %165, %169 : vector<8x32xf32>
    %c8_i32 = arith.constant 8 : i32
    %c0_34 = arith.constant 0 : index
    %c0_35 = arith.constant 0 : index
    %171 = vector.load %arg4[%c0_34, %c0_35] : memref<32x16xf32, #tpu.memory_space<vmem>>, vector<32x16xf32>
    %cst_36 = arith.constant dense<0.000000e+00> : vector<8x16xf32>
    %172 = tpu.matmul %170, %171, %cst_36 {dimension_numbers = #tpu.dot_dimension_numbers<[1], [0], [0], [1], [0, 0, 1, 1], [], []>} : vector<8x32xf32>, vector<32x16xf32>, vector<8x16xf32> -> vector<8x16xf32>
    %c0_37 = arith.constant 0 : index
    %c0_38 = arith.constant 0 : index
    %173 = vector.load %arg5[%c0_37, %c0_38] : memref<1x16xf32, #tpu.memory_space<vmem>>, vector<1x16xf32>
    %174 = vector.broadcast %173 : vector<1x16xf32> to vector<8x16xf32>
    %175 = arith.addf %172, %174 : vector<8x16xf32>
    %cst_39 = arith.constant 0.000000e+00 : f32
    %176 = vector.broadcast %cst_39 : f32 to vector<8x16xf32>
    %177 = arith.maximumf %175, %176 : vector<8x16xf32>
    %c0_40 = arith.constant 0 : index
    %c0_41 = arith.constant 0 : index
    %178 = vector.load %arg6[%c0_40, %c0_41] : memref<16x32xf32, #tpu.memory_space<vmem>>, vector<16x32xf32>
    %cst_42 = arith.constant dense<0.000000e+00> : vector<8x32xf32>
    %179 = tpu.matmul %177, %178, %cst_42 {dimension_numbers = #tpu.dot_dimension_numbers<[1], [0], [0], [1], [0, 0, 1, 1], [], []>} : vector<8x16xf32>, vector<16x32xf32>, vector<8x32xf32> -> vector<8x32xf32>
    %c0_43 = arith.constant 0 : index
    %c0_44 = arith.constant 0 : index
    %180 = vector.load %arg2[%c0_43, %c0_44] : memref<8x4xf32, #tpu.memory_space<vmem>>, vector<8x4xf32>
    %c0_45 = arith.constant 0 : index
    %c0_46 = arith.constant 0 : index
    %181 = vector.load %arg7[%c0_45, %c0_46] : memref<4x32xf32, #tpu.memory_space<vmem>>, vector<4x32xf32>
    %cst_47 = arith.constant dense<0.000000e+00> : vector<8x32xf32>
    %182 = tpu.matmul %180, %181, %cst_47 {dimension_numbers = #tpu.dot_dimension_numbers<[1], [0], [0], [1], [0, 0, 1, 1], [], []>} : vector<8x4xf32>, vector<4x32xf32>, vector<8x32xf32> -> vector<8x32xf32>
    %183 = arith.addf %179, %182 : vector<8x32xf32>
    %c0_48 = arith.constant 0 : index
    %c0_49 = arith.constant 0 : index
    %184 = vector.load %arg8[%c0_48, %c0_49] : memref<1x32xf32, #tpu.memory_space<vmem>>, vector<1x32xf32>
    %185 = vector.broadcast %184 : vector<1x32xf32> to vector<8x32xf32>
    %186 = arith.addf %183, %185 : vector<8x32xf32>
    %cst_50 = arith.constant 0.000000e+00 : f32
    %187 = vector.broadcast %cst_50 : f32 to vector<8x32xf32>
    %188 = arith.maximumf %186, %187 : vector<8x32xf32>
    %c0_51 = arith.constant 0 : index
    %c0_52 = arith.constant 0 : index
    %189 = vector.load %arg9[%c0_51, %c0_52] : memref<32x4xf32, #tpu.memory_space<vmem>>, vector<32x4xf32>
    %c0_53 = arith.constant 0 : index
    %c0_54 = arith.constant 0 : index
    %190 = vector.load %arg10[%c0_53, %c0_54] : memref<1x4xf32, #tpu.memory_space<vmem>>, vector<1x4xf32>
    %cst_55 = arith.constant dense<0.000000e+00> : vector<8x4xf32>
    %191 = tpu.matmul %188, %189, %cst_55 {dimension_numbers = #tpu.dot_dimension_numbers<[1], [0], [0], [1], [0, 0, 1, 1], [], []>} : vector<8x32xf32>, vector<32x4xf32>, vector<8x4xf32> -> vector<8x4xf32>
    %192 = vector.broadcast %190 : vector<1x4xf32> to vector<8x4xf32>
    %193 = arith.addf %191, %192 : vector<8x4xf32>
    %c0_56 = arith.constant 0 : index
    %c0_57 = arith.constant 0 : index
    %194 = vector.load %arg11[%c0_56, %c0_57] : memref<8x4xf32, #tpu.memory_space<vmem>>, vector<8x4xf32>
    tpu.vector_store %arg11[%c0_56, %c0_57], %193 {strides = array<i32>} : memref<8x4xf32, #tpu.memory_space<vmem>>, vector<8x4xf32>,
    return
  }
  func.func @transform_0(%arg0: i32) -> (i32, i32, i32) {
    %c0_i32 = arith.constant 0 : i32
    %c0_i32_0 = arith.constant 0 : i32
    %c0_i32_1 = arith.constant 0 : i32
    return %c0_i32, %arg0, %c0_i32_0 : i32, i32, i32
  }
  func.func @transform_1(%arg0: i32) -> (i32, i32) {
    %c0_i32 = arith.constant 0 : i32
    %c0_i32_0 = arith.constant 0 : i32
    return %arg0, %c0_i32 : i32, i32
  }
  func.func @transform_2(%arg0: i32) -> (i32, i32) {
    %c0_i32 = arith.constant 0 : i32
    %c0_i32_0 = arith.constant 0 : i32
    %c0_i32_1 = arith.constant 0 : i32
    return %c0_i32, %c0_i32_0 : i32, i32
  }
  func.func @transform_3(%arg0: i32) -> (i32, i32) {
    %c0_i32 = arith.constant 0 : i32
    %c0_i32_0 = arith.constant 0 : i32
    %c0_i32_1 = arith.constant 0 : i32
    return %c0_i32, %c0_i32_0 : i32, i32
  }
  func.func @transform_4(%arg0: i32) -> (i32, i32) {
    %c0_i32 = arith.constant 0 : i32
    %c0_i32_0 = arith.constant 0 : i32
    %c0_i32_1 = arith.constant 0 : i32
    return %c0_i32, %c0_i32_0 : i32, i32
  }
  func.func @transform_5(%arg0: i32) -> (i32, i32) {
    %c0_i32 = arith.constant 0 : i32
    %c0_i32_0 = arith.constant 0 : i32
    %c0_i32_1 = arith.constant 0 : i32
    return %c0_i32, %c0_i32_0 : i32, i32
  }
  func.func @transform_6(%arg0: i32) -> (i32, i32) {
    %c0_i32 = arith.constant 0 : i32
    %c0_i32_0 = arith.constant 0 : i32
    %c0_i32_1 = arith.constant 0 : i32
    return %c0_i32, %c0_i32_0 : i32, i32
  }
  func.func @transform_7(%arg0: i32) -> (i32, i32) {
    %c0_i32 = arith.constant 0 : i32
    %c0_i32_0 = arith.constant 0 : i32
    %c0_i32_1 = arith.constant 0 : i32
    return %c0_i32, %c0_i32_0 : i32, i32
  }
  func.func @transform_8(%arg0: i32) -> (i32, i32) {
    %c0_i32 = arith.constant 0 : i32
    %c0_i32_0 = arith.constant 0 : i32
    %c0_i32_1 = arith.constant 0 : i32
    return %c0_i32, %c0_i32_0 : i32, i32
  }
  func.func @transform_9(%arg0: i32) -> (i32, i32) {
    %c0_i32 = arith.constant 0 : i32
    %c0_i32_0 = arith.constant 0 : i32
    %c0_i32_1 = arith.constant 0 : i32
    return %c0_i32, %c0_i32_0 : i32, i32
  }
  func.func @transform_10(%arg0: i32) -> (i32, i32) {
    %c0_i32 = arith.constant 0 : i32
    %c0_i32_0 = arith.constant 0 : i32
    return %arg0, %c0_i32 : i32, i32
  }
}

</mosaic_0001>

<llo_original>
// kernel: tpu_custom_call.1
$region0: #{tpu_custom_call.1}
  #allocation0 [shape = 'u32[]', space=smem, size = 0x4, offset = 0x4, fixed_abs, tag = 'smem constant byte address 0x4 - core index']
  #allocation1 [shape = 'u32[144,128]{1,0:T(1,128)}', space=vmem, size = 0x12000, scoped, tag = 'internal scratch']
  %s0 = inlined_call_operand.vmem [shape: f32[8,8,128], index: 0, kind: input, shape index: {}]
  %s1 = inlined_call_operand.vmem [shape: f32[8,4], index: 1, kind: input, shape index: {}]
  %s2 = inlined_call_operand.vmem [shape: f32[32,128], index: 2, kind: input, shape index: {}]
  %s3 = inlined_call_operand.vmem [shape: f32[32,16], index: 3, kind: input, shape index: {}]
  %s4 = inlined_call_operand.vmem [shape: f32[1,16], index: 4, kind: input, shape index: {}]
  %s5 = inlined_call_operand.hbm [shape: f32[16,32], index: 5, kind: input, shape index: {}]
  %s6 = inlined_call_operand.vmem [shape: f32[4,32], index: 6, kind: input, shape index: {}]
  %s7 = inlined_call_operand.vmem [shape: f32[1,32], index: 7, kind: input, shape index: {}]
  %s8 = inlined_call_operand.vmem [shape: f32[32,4], index: 8, kind: input, shape index: {}]
  %s9 = inlined_call_operand.vmem [shape: f32[1,4], index: 9, kind: input, shape index: {}]
  %s10 = inlined_call_operand.vmem [shape: f32[8,4], index: 10, kind: output, shape index: {}]
  %s11 = sld [smem:[#allocation0]]
  $region54: #{tpu_custom_call.1} parent=0
    _
  %s13 = ssub.s32 1, %s11
  %s14 = scalar_select 0, %s13, %s11
  $region1: #{tpu_custom_call.1} parent=0
    #allocation2 [shape = 'u8[8192]{0}', space=vmem, size = 0x2000, scoped, tag = 'input window, operand 5, single buffered']
    #allocation3 [shape = 's32[1]{0}', space=sflag, size = 0x4, scoped, tag = 'scoped memory for tpu_custom_call.1']
    %15 = vsyncpa [#allocation3], 0
    // Predicated region
    $region2: #{tpu_custom_call.1} parent=1 // pred_check
      _
    $region3: #{tpu_custom_call.1} parent=1 // pred_check_branch
      %17 = sbr.rel (0) target = $region5
    $region4: #{tpu_custom_call.1} parent=1 // pred_region
      _
    $region5: #{tpu_custom_call.1} parent=1 // pred_fallthru
      _
    // Predicated region
    $region6: #{tpu_custom_call.1} parent=1 // pred_check
      _
    $region7: #{tpu_custom_call.1} parent=1 // pred_check_branch
      %19 = sbr.rel (0) target = $region9
    $region8: #{tpu_custom_call.1} parent=1 // pred_region
      _
    $region9: #{tpu_custom_call.1} parent=1 // pred_fallthru
      _
    // Predicated region
    $region10: #{tpu_custom_call.1} parent=1 // pred_check
      _
    $region11: #{tpu_custom_call.1} parent=1 // pred_check_branch
      %21 = sbr.rel (0) target = $region13
    $region12: #{tpu_custom_call.1} parent=1 // pred_region
      _
    $region13: #{tpu_custom_call.1} parent=1 // pred_fallthru
      _
    // Predicated region
    $region14: #{tpu_custom_call.1} parent=1 // pred_check
      _
    $region15: #{tpu_custom_call.1} parent=1 // pred_check_branch
      %23 = sbr.rel (0) target = $region17
    $region16: #{tpu_custom_call.1} parent=1 // pred_region
      _
    $region17: #{tpu_custom_call.1} parent=1 // pred_fallthru
      _
    // Predicated region
    $region18: #{tpu_custom_call.1} parent=1 // pred_check
      _
    $region19: #{tpu_custom_call.1} parent=1 // pred_check_branch
      %25 = sbr.rel (0) target = $region21
    $region20: #{tpu_custom_call.1} parent=1 // pred_region
      _
    $region21: #{tpu_custom_call.1} parent=1 // pred_fallthru
      _
    // Predicated region
    $region22: #{tpu_custom_call.1} parent=1 // pred_check
      _
    $region23: #{tpu_custom_call.1} parent=1 // pred_check_branch
      %27 = sbr.rel (0) target = $region25
    $region24: #{tpu_custom_call.1} parent=1 // pred_region
      %s29 = ssub.s32 256, 256
      %30 = vsyncadd [#allocation3], %s29
      %s31 = sshll.u32 [#allocation2], 4
      %s32 = int_to_ptr.vmem [resolvable:$true] %s31
      %37 = dma.hbm_to_vmem [thread:$0]  %s5, 256, %s32, [#allocation3], 128, 128, 8
    $region25: #{tpu_custom_call.1} parent=1 // pred_fallthru
      _
    // Predicated region
    $region26: #{tpu_custom_call.1} parent=1 // pred_check
      _
    $region27: #{tpu_custom_call.1} parent=1 // pred_check_branch
      %39 = sbr.rel (0) target = $region29
    $region28: #{tpu_custom_call.1} parent=1 // pred_region
      _
    $region29: #{tpu_custom_call.1} parent=1 // pred_fallthru
      _
    // Predicated region
    $region30: #{tpu_custom_call.1} parent=1 // pred_check
      _
    $region31: #{tpu_custom_call.1} parent=1 // pred_check_branch
      %41 = sbr.rel (0) target = $region33
    $region32: #{tpu_custom_call.1} parent=1 // pred_region
      _
    $region33: #{tpu_custom_call.1} parent=1 // pred_fallthru
      _
    // Predicated region
    $region34: #{tpu_custom_call.1} parent=1 // pred_check
      _
    $region35: #{tpu_custom_call.1} parent=1 // pred_check_branch
      %43 = sbr.rel (0) target = $region37
    $region36: #{tpu_custom_call.1} parent=1 // pred_region
      _
    $region37: #{tpu_custom_call.1} parent=1 // pred_fallthru
      _
    // Predicated region
    $region38: #{tpu_custom_call.1} parent=1 // pred_check
      _
    $region39: #{tpu_custom_call.1} parent=1 // pred_check_branch
      %45 = sbr.rel (0) target = $region41
    $region40: #{tpu_custom_call.1} parent=1 // pred_region
      _
    $region41: #{tpu_custom_call.1} parent=1 // pred_fallthru
      _
    // Predicated region
    $region42: #{tpu_custom_call.1} parent=1 // pred_check
      _
    $region43: #{tpu_custom_call.1} parent=1 // pred_check_branch
      %47 = sbr.rel (0) target = $region45
    $region44: #{tpu_custom_call.1} parent=1 // pred_region
      %48 = dma.done [#allocation3], 256
    $region45: #{tpu_custom_call.1} parent=1 // pred_fallthru
      _
    %v49 = vld [vmem:[%s2] sm:$0xff]
    %v50 = vld [vmem:[%s2 + $0x8] sm:$0xff]
    %v51 = vld [vmem:[%s2 + $0x10] sm:$0xff]
    %v52 = vld [vmem:[%s2 + $0x18] sm:$0xff]
    %v53 = vld [vmem:[%s0] sm:$0xff]
    %vm54 = vcmask 261120
    %v56 = vsel %vm54, 0.0, 0
    %58 = vmatprep.subr.mxu0 0.0
    %59 = vmatpush1.msra.mxu0 0.0
    %60 = vmatprep.subr.mxu0 0.0
    %61 = vmatpush1.msra.mxu0 0.0
    %62 = vmatprep.subr.mxu0 0.0
    %63 = vmatpush1.msra.mxu0 0.0
    %64 = vmatprep.subr.mxu0 0.0
    %65 = vmatpush1.msra.mxu0 0.0
    %66 = vmatprep.subr.mxu0 0.0
    %67 = vmatpush1.msra.mxu0 0.0
    %68 = vmatprep.subr.mxu0 0.0
    %69 = vmatpush1.msra.mxu0 0.0
    %70 = vmatprep.subr.mxu0 0.0
    %71 = vmatpush1.msra.mxu0 0.0
    %72 = vmatprep.subr.mxu0 0.0
    %73 = vmatpush1.msra.mxu0 0.0
    %74 = vmatprep.subr.mxu0 0.0
    %75 = vmatpush1.msra.mxu0 0.0
    %76 = vmatprep.subr.mxu0 0.0
    %77 = vmatpush1.msra.mxu0 0.0
    %78 = vmatprep.subr.mxu0 0.0
    %79 = vmatpush1.msra.mxu0 0.0
    %80 = vmatprep.subr.mxu0 0.0
    %81 = vmatpush1.msra.mxu0 0.0
    %82 = vmatprep.subr.mxu0 0.0
    %83 = vmatpush1.msra.mxu0 %v52
    %84 = vmatprep.subr.mxu0 0.0
    %85 = vmatpush1.msra.mxu0 %v51
    %86 = vmatprep.subr.mxu0 0.0
    %87 = vmatpush1.msra.mxu0 %v50
    %88 = vmatprep.subr.mxu0 0.0
    %89 = vmatpush1.msra.mxu0 %v49
    %90 = vmatprep.subr.mxu0 0.0
    %91 = vmatpush2.msra.mxu0 0.0
    %92 = vmatprep.subr.mxu0 0.0
    %93 = vmatpush2.msra.mxu0 0.0
    %94 = vmatprep.subr.mxu0 0.0
    %95 = vmatpush2.msra.mxu0 0.0
    %96 = vmatprep.subr.mxu0 0.0
    %97 = vmatpush2.msra.mxu0 0.0
    %98 = vmatprep.subr.mxu0 0.0
    %99 = vmatpush2.msra.mxu0 0.0
    %100 = vmatprep.subr.mxu0 0.0
    %101 = vmatpush2.msra.mxu0 0.0
    %102 = vmatprep.subr.mxu0 0.0
    %103 = vmatpush2.msra.mxu0 0.0
    %104 = vmatprep.subr.mxu0 0.0
    %105 = vmatpush2.msra.mxu0 0.0
    %106 = vmatprep.subr.mxu0 0.0
    %107 = vmatpush2.msra.mxu0 0.0
    %108 = vmatprep.subr.mxu0 0.0
    %109 = vmatpush2.msra.mxu0 0.0
    %110 = vmatprep.subr.mxu0 0.0
    %111 = vmatpush2.msra.mxu0 0.0
    %112 = vmatprep.subr.mxu0 0.0
    %113 = vmatpush2.msra.mxu0 0.0
    %114 = vmatprep.subr.mxu0 0.0
    %115 = vmatpush2.msra.mxu0 0.0
    %116 = vmatprep.subr.mxu0 0.0
    %117 = vmatpush2.msra.mxu0 0.0
    %118 = vmatprep.subr.mxu0 0.0
    %119 = vmatpush2.msra.mxu0 0.0
    %120 = vmatprep.subr.mxu0 0.0
    %121 = vmatpush2.msra.mxu0 0.0
    %122 = vmatprep.mubr.f32.mxu0 0.0
    %123 = vmatmul.mubr.f32.gmra.mxu0 %v56
    %v124 = vpop.f32.mrf.mxu0
    %v125 = vadd.f32 0.0, %v124
    %v126 = vpop.f32.mrf.mxu0
    %127 = vdwg.mxu0
    %v128 = vadd.f32 %v53, %v125
    %v129 = vxor.u32 %v128, 2147483648
    %v130 = vmul.f32 %v129, 1.442695
    %v131 = vpow.pop %v130
    %v132 = vadd.f32 %v131, 1.0
    %v133 = vrcp.pop %v132
    %v134 = vmul.f32 1.0, %v133
    %v135 = vtanh.pop %v128
    %v136 = vmul.f32 %v134, 0.0
    %138 = vrot.lane.b32.xlu0 %v135, 32
    %v139 = vpop.permute.xlu0 %138
    %v141 = vmul.f32 %v134, %v139
    %143 = vrot.lane.b32.xlu0 %v141, 32
    %v144 = vpop.permute.xlu0 %143
    %v146 = vadd.f32 %v136, %v144
    %v147 = vtanh.pop %v146
    %149 = vrot.lane.b32.xlu0 %v147, 32
    %v150 = vpop.permute.xlu0 %149
    %v152 = vmul.f32 %v134, %v150
    %s153 = scalar_lea.vmem %s0, 8
    %v154 = vld [vmem:[%s153] sm:$0xff]
    %156 = vrot.lane.b32.xlu0 %v152, 64
    %v157 = vpop.permute.xlu0 %156
    %v158 = vsel %vm54, %v157, 0
    %160 = vmatprep.subr.mxu0 0.0
    %161 = vmatpush1.msra.mxu0 0.0
    %162 = vmatprep.subr.mxu0 0.0
    %163 = vmatpush1.msra.mxu0 0.0
    %164 = vmatprep.subr.mxu0 0.0
    %165 = vmatpush1.msra.mxu0 0.0
    %166 = vmatprep.subr.mxu0 0.0
    %167 = vmatpush1.msra.mxu0 0.0
    %168 = vmatprep.subr.mxu0 0.0
    %169 = vmatpush1.msra.mxu0 0.0
    %170 = vmatprep.subr.mxu0 0.0
    %171 = vmatpush1.msra.mxu0 0.0
    %172 = vmatprep.subr.mxu0 0.0
    %173 = vmatpush1.msra.mxu0 0.0
    %174 = vmatprep.subr.mxu0 0.0
    %175 = vmatpush1.msra.mxu0 0.0
    %176 = vmatprep.subr.mxu0 0.0
    %177 = vmatpush1.msra.mxu0 0.0
    %178 = vmatprep.subr.mxu0 0.0
    %179 = vmatpush1.msra.mxu0 0.0
    %180 = vmatprep.subr.mxu0 0.0
    %181 = vmatpush1.msra.mxu0 0.0
    %182 = vmatprep.subr.mxu0 0.0
    %183 = vmatpush1.msra.mxu0 0.0
    %184 = vmatprep.subr.mxu0 0.0
    %185 = vmatpush1.msra.mxu0 %v52
    %186 = vmatprep.subr.mxu0 0.0
    %187 = vmatpush1.msra.mxu0 %v51
    %188 = vmatprep.subr.mxu0 0.0
    %189 = vmatpush1.msra.mxu0 %v50
    %190 = vmatprep.subr.mxu0 0.0
    %191 = vmatpush1.msra.mxu0 %v49
    %192 = vmatprep.subr.mxu0 0.0
    %193 = vmatpush2.msra.mxu0 0.0
    %194 = vmatprep.subr.mxu0 0.0
    %195 = vmatpush2.msra.mxu0 0.0
    %196 = vmatprep.subr.mxu0 0.0
    %197 = vmatpush2.msra.mxu0 0.0
    %198 = vmatprep.subr.mxu0 0.0
    %199 = vmatpush2.msra.mxu0 0.0
    %200 = vmatprep.subr.mxu0 0.0
    %201 = vmatpush2.msra.mxu0 0.0
    %202 = vmatprep.subr.mxu0 0.0
    %203 = vmatpush2.msra.mxu0 0.0
    %204 = vmatprep.subr.mxu0 0.0
    %205 = vmatpush2.msra.mxu0 0.0
    %206 = vmatprep.subr.mxu0 0.0
    %207 = vmatpush2.msra.mxu0 0.0
    %208 = vmatprep.subr.mxu0 0.0
    %209 = vmatpush2.msra.mxu0 0.0
    %210 = vmatprep.subr.mxu0 0.0
    %211 = vmatpush2.msra.mxu0 0.0
    %212 = vmatprep.subr.mxu0 0.0
    %213 = vmatpush2.msra.mxu0 0.0
    %214 = vmatprep.subr.mxu0 0.0
    %215 = vmatpush2.msra.mxu0 0.0
    %216 = vmatprep.subr.mxu0 0.0
    %217 = vmatpush2.msra.mxu0 0.0
    %218 = vmatprep.subr.mxu0 0.0
    %219 = vmatpush2.msra.mxu0 0.0
    %220 = vmatprep.subr.mxu0 0.0
    %221 = vmatpush2.msra.mxu0 0.0
    %222 = vmatprep.subr.mxu0 0.0
    %223 = vmatpush2.msra.mxu0 0.0
    %224 = vmatprep.mubr.f32.mxu0 0.0
    %225 = vmatmul.mubr.f32.gmra.mxu0 %v158
    %v226 = vpop.f32.mrf.mxu0
    %v227 = vadd.f32 0.0, %v226
    %v228 = vpop.f32.mrf.mxu0
    %229 = vdwg.mxu0
    %v230 = vadd.f32 %v154, %v227
    %v231 = vxor.u32 %v230, 2147483648
    %v232 = vmul.f32 %v231, 1.442695
    %v233 = vpow.pop %v232
    %v234 = vadd.f32 %v233, 1.0
    %v235 = vrcp.pop %v234
    %v236 = vmul.f32 1.0, %v235
    %v237 = vtanh.pop %v230
    %v238 = vmul.f32 %v236, %v146
    %240 = vrot.lane.b32.xlu0 %v237, 32
    %v241 = vpop.permute.xlu0 %240
    %v243 = vmul.f32 %v236, %v241
    %245 = vrot.lane.b32.xlu0 %v243, 32
    %v246 = vpop.permute.xlu0 %245
    %v248 = vadd.f32 %v238, %v246
    %v249 = vtanh.pop %v248
    %251 = vrot.lane.b32.xlu0 %v249, 32
    %v252 = vpop.permute.xlu0 %251
    %v254 = vmul.f32 %v236, %v252
    %s255 = scalar_lea.vmem %s0, 16
    %v256 = vld [vmem:[%s255] sm:$0xff]
    %258 = vrot.lane.b32.xlu0 %v254, 64
    %v259 = vpop.permute.xlu0 %258
    %v260 = vsel %vm54, %v259, 0
    %262 = vmatprep.subr.mxu0 0.0
    %263 = vmatpush1.msra.mxu0 0.0
    %264 = vmatprep.subr.mxu0 0.0
    %265 = vmatpush1.msra.mxu0 0.0
    %266 = vmatprep.subr.mxu0 0.0
    %267 = vmatpush1.msra.mxu0 0.0
    %268 = vmatprep.subr.mxu0 0.0
    %269 = vmatpush1.msra.mxu0 0.0
    %270 = vmatprep.subr.mxu0 0.0
    %271 = vmatpush1.msra.mxu0 0.0
    %272 = vmatprep.subr.mxu0 0.0
    %273 = vmatpush1.msra.mxu0 0.0
    %274 = vmatprep.subr.mxu0 0.0
    %275 = vmatpush1.msra.mxu0 0.0
    %276 = vmatprep.subr.mxu0 0.0
    %277 = vmatpush1.msra.mxu0 0.0
    %278 = vmatprep.subr.mxu0 0.0
    %279 = vmatpush1.msra.mxu0 0.0
    %280 = vmatprep.subr.mxu0 0.0
    %281 = vmatpush1.msra.mxu0 0.0
    %282 = vmatprep.subr.mxu0 0.0
    %283 = vmatpush1.msra.mxu0 0.0
    %284 = vmatprep.subr.mxu0 0.0
    %285 = vmatpush1.msra.mxu0 0.0
    %286 = vmatprep.subr.mxu0 0.0
    %287 = vmatpush1.msra.mxu0 %v52
    %288 = vmatprep.subr.mxu0 0.0
    %289 = vmatpush1.msra.mxu0 %v51
    %290 = vmatprep.subr.mxu0 0.0
    %291 = vmatpush1.msra.mxu0 %v50
    %292 = vmatprep.subr.mxu0 0.0
    %293 = vmatpush1.msra.mxu0 %v49
    %294 = vmatprep.subr.mxu0 0.0
    %295 = vmatpush2.msra.mxu0 0.0
    %296 = vmatprep.subr.mxu0 0.0
    %297 = vmatpush2.msra.mxu0 0.0
    %298 = vmatprep.subr.mxu0 0.0
    %299 = vmatpush2.msra.mxu0 0.0
    %300 = vmatprep.subr.mxu0 0.0
    %301 = vmatpush2.msra.mxu0 0.0
    %302 = vmatprep.subr.mxu0 0.0
    %303 = vmatpush2.msra.mxu0 0.0
    %304 = vmatprep.subr.mxu0 0.0
    %305 = vmatpush2.msra.mxu0 0.0
    %306 = vmatprep.subr.mxu0 0.0
    %307 = vmatpush2.msra.mxu0 0.0
    %308 = vmatprep.subr.mxu0 0.0
    %309 = vmatpush2.msra.mxu0 0.0
    %310 = vmatprep.subr.mxu0 0.0
    %311 = vmatpush2.msra.mxu0 0.0
    %312 = vmatprep.subr.mxu0 0.0
    %313 = vmatpush2.msra.mxu0 0.0
    %314 = vmatprep.subr.mxu0 0.0
    %315 = vmatpush2.msra.mxu0 0.0
    %316 = vmatprep.subr.mxu0 0.0
    %317 = vmatpush2.msra.mxu0 0.0
    %318 = vmatprep.subr.mxu0 0.0
    %319 = vmatpush2.msra.mxu0 0.0
    %320 = vmatprep.subr.mxu0 0.0
    %321 = vmatpush2.msra.mxu0 0.0
    %322 = vmatprep.subr.mxu0 0.0
    %323 = vmatpush2.msra.mxu0 0.0
    %324 = vmatprep.subr.mxu0 0.0
    %325 = vmatpush2.msra.mxu0 0.0
    %326 = vmatprep.mubr.f32.mxu0 0.0
    %327 = vmatmul.mubr.f32.gmra.mxu0 %v260
    %v328 = vpop.f32.mrf.mxu0
    %v329 = vadd.f32 0.0, %v328
    %v330 = vpop.f32.mrf.mxu0
    %331 = vdwg.mxu0
    %v332 = vadd.f32 %v256, %v329
    %v333 = vxor.u32 %v332, 2147483648
    %v334 = vmul.f32 %v333, 1.442695
    %v335 = vpow.pop %v334
    %v336 = vadd.f32 %v335, 1.0
    %v337 = vrcp.pop %v336
    %v338 = vmul.f32 1.0, %v337
    %v339 = vtanh.pop %v332
    %v340 = vmul.f32 %v338, %v248
    %342 = vrot.lane.b32.xlu0 %v339, 32
    %v343 = vpop.permute.xlu0 %342
    %v345 = vmul.f32 %v338, %v343
    %347 = vrot.lane.b32.xlu0 %v345, 32
    %v348 = vpop.permute.xlu0 %347
    %v350 = vadd.f32 %v340, %v348
    %v351 = vtanh.pop %v350
    %353 = vrot.lane.b32.xlu0 %v351, 32
    %v354 = vpop.permute.xlu0 %353
    %v356 = vmul.f32 %v338, %v354
    %s357 = scalar_lea.vmem %s0, 24
    %v358 = vld [vmem:[%s357] sm:$0xff]
    %360 = vrot.lane.b32.xlu0 %v356, 64
    %v361 = vpop.permute.xlu0 %360
    %v362 = vsel %vm54, %v361, 0
    %364 = vmatprep.subr.mxu0 0.0
    %365 = vmatpush1.msra.mxu0 0.0
    %366 = vmatprep.subr.mxu0 0.0
    %367 = vmatpush1.msra.mxu0 0.0
    %368 = vmatprep.subr.mxu0 0.0
    %369 = vmatpush1.msra.mxu0 0.0
    %370 = vmatprep.subr.mxu0 0.0
    %371 = vmatpush1.msra.mxu0 0.0
    %372 = vmatprep.subr.mxu0 0.0
    %373 = vmatpush1.msra.mxu0 0.0
    %374 = vmatprep.subr.mxu0 0.0
    %375 = vmatpush1.msra.mxu0 0.0
    %376 = vmatprep.subr.mxu0 0.0
    %377 = vmatpush1.msra.mxu0 0.0
    %378 = vmatprep.subr.mxu0 0.0
    %379 = vmatpush1.msra.mxu0 0.0
    %380 = vmatprep.subr.mxu0 0.0
    %381 = vmatpush1.msra.mxu0 0.0
    %382 = vmatprep.subr.mxu0 0.0
    %383 = vmatpush1.msra.mxu0 0.0
    %384 = vmatprep.subr.mxu0 0.0
    %385 = vmatpush1.msra.mxu0 0.0
    %386 = vmatprep.subr.mxu0 0.0
    %387 = vmatpush1.msra.mxu0 0.0
    %388 = vmatprep.subr.mxu0 0.0
    %389 = vmatpush1.msra.mxu0 %v52
    %390 = vmatprep.subr.mxu0 0.0
    %391 = vmatpush1.msra.mxu0 %v51
    %392 = vmatprep.subr.mxu0 0.0
    %393 = vmatpush1.msra.mxu0 %v50
    %394 = vmatprep.subr.mxu0 0.0
    %395 = vmatpush1.msra.mxu0 %v49
    %396 = vmatprep.subr.mxu0 0.0
    %397 = vmatpush2.msra.mxu0 0.0
    %398 = vmatprep.subr.mxu0 0.0
    %399 = vmatpush2.msra.mxu0 0.0
    %400 = vmatprep.subr.mxu0 0.0
    %401 = vmatpush2.msra.mxu0 0.0
    %402 = vmatprep.subr.mxu0 0.0
    %403 = vmatpush2.msra.mxu0 0.0
    %404 = vmatprep.subr.mxu0 0.0
    %405 = vmatpush2.msra.mxu0 0.0
    %406 = vmatprep.subr.mxu0 0.0
    %407 = vmatpush2.msra.mxu0 0.0
    %408 = vmatprep.subr.mxu0 0.0
    %409 = vmatpush2.msra.mxu0 0.0
    %410 = vmatprep.subr.mxu0 0.0
    %411 = vmatpush2.msra.mxu0 0.0
    %412 = vmatprep.subr.mxu0 0.0
    %413 = vmatpush2.msra.mxu0 0.0
    %414 = vmatprep.subr.mxu0 0.0
    %415 = vmatpush2.msra.mxu0 0.0
    %416 = vmatprep.subr.mxu0 0.0
    %417 = vmatpush2.msra.mxu0 0.0
    %418 = vmatprep.subr.mxu0 0.0
    %419 = vmatpush2.msra.mxu0 0.0
    %420 = vmatprep.subr.mxu0 0.0
    %421 = vmatpush2.msra.mxu0 0.0
    %422 = vmatprep.subr.mxu0 0.0
    %423 = vmatpush2.msra.mxu0 0.0
    %424 = vmatprep.subr.mxu0 0.0
    %425 = vmatpush2.msra.mxu0 0.0
    %426 = vmatprep.subr.mxu0 0.0
    %427 = vmatpush2.msra.mxu0 0.0
    %428 = vmatprep.mubr.f32.mxu0 0.0
    %429 = vmatmul.mubr.f32.gmra.mxu0 %v362
    %v430 = vpop.f32.mrf.mxu0
    %v431 = vadd.f32 0.0, %v430
    %v432 = vpop.f32.mrf.mxu0
    %433 = vdwg.mxu0
    %v434 = vadd.f32 %v358, %v431
    %v435 = vxor.u32 %v434, 2147483648
    %v436 = vmul.f32 %v435, 1.442695
    %v437 = vpow.pop %v436
    %v438 = vadd.f32 %v437, 1.0
    %v439 = vrcp.pop %v438
    %v440 = vmul.f32 1.0, %v439
    %v441 = vtanh.pop %v434
    %v442 = vmul.f32 %v440, %v350
    %444 = vrot.lane.b32.xlu0 %v441, 32
    %v445 = vpop.permute.xlu0 %444
    %v447 = vmul.f32 %v440, %v445
    %449 = vrot.lane.b32.xlu0 %v447, 32
    %v450 = vpop.permute.xlu0 %449
    %v452 = vadd.f32 %v442, %v450
    %v453 = vtanh.pop %v452
    %455 = vrot.lane.b32.xlu0 %v453, 32
    %v456 = vpop.permute.xlu0 %455
    %v458 = vmul.f32 %v440, %v456
    %s459 = scalar_lea.vmem %s0, 32
    %v460 = vld [vmem:[%s459] sm:$0xff]
    %462 = vrot.lane.b32.xlu0 %v458, 64
    %v463 = vpop.permute.xlu0 %462
    %v464 = vsel %vm54, %v463, 0
    %466 = vmatprep.subr.mxu0 0.0
    %467 = vmatpush1.msra.mxu0 0.0
    %468 = vmatprep.subr.mxu0 0.0
    %469 = vmatpush1.msra.mxu0 0.0
    %470 = vmatprep.subr.mxu0 0.0
    %471 = vmatpush1.msra.mxu0 0.0
    %472 = vmatprep.subr.mxu0 0.0
    %473 = vmatpush1.msra.mxu0 0.0
    %474 = vmatprep.subr.mxu0 0.0
    %475 = vmatpush1.msra.mxu0 0.0
    %476 = vmatprep.subr.mxu0 0.0
    %477 = vmatpush1.msra.mxu0 0.0
    %478 = vmatprep.subr.mxu0 0.0
    %479 = vmatpush1.msra.mxu0 0.0
    %480 = vmatprep.subr.mxu0 0.0
    %481 = vmatpush1.msra.mxu0 0.0
    %482 = vmatprep.subr.mxu0 0.0
    %483 = vmatpush1.msra.mxu0 0.0
    %484 = vmatprep.subr.mxu0 0.0
    %485 = vmatpush1.msra.mxu0 0.0
    %486 = vmatprep.subr.mxu0 0.0
    %487 = vmatpush1.msra.mxu0 0.0
    %488 = vmatprep.subr.mxu0 0.0
    %489 = vmatpush1.msra.mxu0 0.0
    %490 = vmatprep.subr.mxu0 0.0
    %491 = vmatpush1.msra.mxu0 %v52
    %492 = vmatprep.subr.mxu0 0.0
    %493 = vmatpush1.msra.mxu0 %v51
    %494 = vmatprep.subr.mxu0 0.0
    %495 = vmatpush1.msra.mxu0 %v50
    %496 = vmatprep.subr.mxu0 0.0
    %497 = vmatpush1.msra.mxu0 %v49
    %498 = vmatprep.subr.mxu0 0.0
    %499 = vmatpush2.msra.mxu0 0.0
    %500 = vmatprep.subr.mxu0 0.0
    %501 = vmatpush2.msra.mxu0 0.0
    %502 = vmatprep.subr.mxu0 0.0
    %503 = vmatpush2.msra.mxu0 0.0
    %504 = vmatprep.subr.mxu0 0.0
    %505 = vmatpush2.msra.mxu0 0.0
    %506 = vmatprep.subr.mxu0 0.0
    %507 = vmatpush2.msra.mxu0 0.0
    %508 = vmatprep.subr.mxu0 0.0
    %509 = vmatpush2.msra.mxu0 0.0
    %510 = vmatprep.subr.mxu0 0.0
    %511 = vmatpush2.msra.mxu0 0.0
    %512 = vmatprep.subr.mxu0 0.0
    %513 = vmatpush2.msra.mxu0 0.0
    %514 = vmatprep.subr.mxu0 0.0
    %515 = vmatpush2.msra.mxu0 0.0
    %516 = vmatprep.subr.mxu0 0.0
    %517 = vmatpush2.msra.mxu0 0.0
    %518 = vmatprep.subr.mxu0 0.0
    %519 = vmatpush2.msra.mxu0 0.0
    %520 = vmatprep.subr.mxu0 0.0
    %521 = vmatpush2.msra.mxu0 0.0
    %522 = vmatprep.subr.mxu0 0.0
    %523 = vmatpush2.msra.mxu0 0.0
    %524 = vmatprep.subr.mxu0 0.0
    %525 = vmatpush2.msra.mxu0 0.0
    %526 = vmatprep.subr.mxu0 0.0
    %527 = vmatpush2.msra.mxu0 0.0
    %528 = vmatprep.subr.mxu0 0.0
    %529 = vmatpush2.msra.mxu0 0.0
    %530 = vmatprep.mubr.f32.mxu0 0.0
    %531 = vmatmul.mubr.f32.gmra.mxu0 %v464
    %v532 = vpop.f32.mrf.mxu0
    %v533 = vadd.f32 0.0, %v532
    %v534 = vpop.f32.mrf.mxu0
    %535 = vdwg.mxu0
    %v536 = vadd.f32 %v460, %v533
    %v537 = vxor.u32 %v536, 2147483648
    %v538 = vmul.f32 %v537, 1.442695
    %v539 = vpow.pop %v538
    %v540 = vadd.f32 %v539, 1.0
    %v541 = vrcp.pop %v540
    %v542 = vmul.f32 1.0, %v541
    %v543 = vtanh.pop %v536
    %v544 = vmul.f32 %v542, %v452
    %546 = vrot.lane.b32.xlu0 %v543, 32
    %v547 = vpop.permute.xlu0 %546
    %v549 = vmul.f32 %v542, %v547
    %551 = vrot.lane.b32.xlu0 %v549, 32
    %v552 = vpop.permute.xlu0 %551
    %v554 = vadd.f32 %v544, %v552
    %v555 = vtanh.pop %v554
    %557 = vrot.lane.b32.xlu0 %v555, 32
    %v558 = vpop.permute.xlu0 %557
    %v560 = vmul.f32 %v542, %v558
    %s561 = scalar_lea.vmem %s0, 40
    %v562 = vld [vmem:[%s561] sm:$0xff]
    %564 = vrot.lane.b32.xlu0 %v560, 64
    %v565 = vpop.permute.xlu0 %564
    %v566 = vsel %vm54, %v565, 0
    %568 = vmatprep.subr.mxu0 0.0
    %569 = vmatpush1.msra.mxu0 0.0
    %570 = vmatprep.subr.mxu0 0.0
    %571 = vmatpush1.msra.mxu0 0.0
    %572 = vmatprep.subr.mxu0 0.0
    %573 = vmatpush1.msra.mxu0 0.0
    %574 = vmatprep.subr.mxu0 0.0
    %575 = vmatpush1.msra.mxu0 0.0
    %576 = vmatprep.subr.mxu0 0.0
    %577 = vmatpush1.msra.mxu0 0.0
    %578 = vmatprep.subr.mxu0 0.0
    %579 = vmatpush1.msra.mxu0 0.0
    %580 = vmatprep.subr.mxu0 0.0
    %581 = vmatpush1.msra.mxu0 0.0
    %582 = vmatprep.subr.mxu0 0.0
    %583 = vmatpush1.msra.mxu0 0.0
    %584 = vmatprep.subr.mxu0 0.0
    %585 = vmatpush1.msra.mxu0 0.0
    %586 = vmatprep.subr.mxu0 0.0
    %587 = vmatpush1.msra.mxu0 0.0
    %588 = vmatprep.subr.mxu0 0.0
    %589 = vmatpush1.msra.mxu0 0.0
    %590 = vmatprep.subr.mxu0 0.0
    %591 = vmatpush1.msra.mxu0 0.0
    %592 = vmatprep.subr.mxu0 0.0
    %593 = vmatpush1.msra.mxu0 %v52
    %594 = vmatprep.subr.mxu0 0.0
    %595 = vmatpush1.msra.mxu0 %v51
    %596 = vmatprep.subr.mxu0 0.0
    %597 = vmatpush1.msra.mxu0 %v50
    %598 = vmatprep.subr.mxu0 0.0
    %599 = vmatpush1.msra.mxu0 %v49
    %600 = vmatprep.subr.mxu0 0.0
    %601 = vmatpush2.msra.mxu0 0.0
    %602 = vmatprep.subr.mxu0 0.0
    %603 = vmatpush2.msra.mxu0 0.0
    %604 = vmatprep.subr.mxu0 0.0
    %605 = vmatpush2.msra.mxu0 0.0
    %606 = vmatprep.subr.mxu0 0.0
    %607 = vmatpush2.msra.mxu0 0.0
    %608 = vmatprep.subr.mxu0 0.0
    %609 = vmatpush2.msra.mxu0 0.0
    %610 = vmatprep.subr.mxu0 0.0
    %611 = vmatpush2.msra.mxu0 0.0
    %612 = vmatprep.subr.mxu0 0.0
    %613 = vmatpush2.msra.mxu0 0.0
    %614 = vmatprep.subr.mxu0 0.0
    %615 = vmatpush2.msra.mxu0 0.0
    %616 = vmatprep.subr.mxu0 0.0
    %617 = vmatpush2.msra.mxu0 0.0
    %618 = vmatprep.subr.mxu0 0.0
    %619 = vmatpush2.msra.mxu0 0.0
    %620 = vmatprep.subr.mxu0 0.0
    %621 = vmatpush2.msra.mxu0 0.0
    %622 = vmatprep.subr.mxu0 0.0
    %623 = vmatpush2.msra.mxu0 0.0
    %624 = vmatprep.subr.mxu0 0.0
    %625 = vmatpush2.msra.mxu0 0.0
    %626 = vmatprep.subr.mxu0 0.0
    %627 = vmatpush2.msra.mxu0 0.0
    %628 = vmatprep.subr.mxu0 0.0
    %629 = vmatpush2.msra.mxu0 0.0
    %630 = vmatprep.subr.mxu0 0.0
    %631 = vmatpush2.msra.mxu0 0.0
    %632 = vmatprep.mubr.f32.mxu0 0.0
    %633 = vmatmul.mubr.f32.gmra.mxu0 %v566
    %v634 = vpop.f32.mrf.mxu0
    %v635 = vadd.f32 0.0, %v634
    %v636 = vpop.f32.mrf.mxu0
    %637 = vdwg.mxu0
    %v638 = vadd.f32 %v562, %v635
    %v639 = vxor.u32 %v638, 2147483648
    %v640 = vmul.f32 %v639, 1.442695
    %v641 = vpow.pop %v640
    %v642 = vadd.f32 %v641, 1.0
    %v643 = vrcp.pop %v642
    %v644 = vmul.f32 1.0, %v643
    %v645 = vtanh.pop %v638
    %v646 = vmul.f32 %v644, %v554
    %648 = vrot.lane.b32.xlu0 %v645, 32
    %v649 = vpop.permute.xlu0 %648
    %v651 = vmul.f32 %v644, %v649
    %653 = vrot.lane.b32.xlu0 %v651, 32
    %v654 = vpop.permute.xlu0 %653
    %v656 = vadd.f32 %v646, %v654
    %v657 = vtanh.pop %v656
    %659 = vrot.lane.b32.xlu0 %v657, 32
    %v660 = vpop.permute.xlu0 %659
    %v662 = vmul.f32 %v644, %v660
    %s663 = scalar_lea.vmem %s0, 48
    %v664 = vld [vmem:[%s663] sm:$0xff]
    %666 = vrot.lane.b32.xlu0 %v662, 64
    %v667 = vpop.permute.xlu0 %666
    %v668 = vsel %vm54, %v667, 0
    %670 = vmatprep.subr.mxu0 0.0
    %671 = vmatpush1.msra.mxu0 0.0
    %672 = vmatprep.subr.mxu0 0.0
    %673 = vmatpush1.msra.mxu0 0.0
    %674 = vmatprep.subr.mxu0 0.0
    %675 = vmatpush1.msra.mxu0 0.0
    %676 = vmatprep.subr.mxu0 0.0
    %677 = vmatpush1.msra.mxu0 0.0
    %678 = vmatprep.subr.mxu0 0.0
    %679 = vmatpush1.msra.mxu0 0.0
    %680 = vmatprep.subr.mxu0 0.0
    %681 = vmatpush1.msra.mxu0 0.0
    %682 = vmatprep.subr.mxu0 0.0
    %683 = vmatpush1.msra.mxu0 0.0
    %684 = vmatprep.subr.mxu0 0.0
    %685 = vmatpush1.msra.mxu0 0.0
    %686 = vmatprep.subr.mxu0 0.0
    %687 = vmatpush1.msra.mxu0 0.0
    %688 = vmatprep.subr.mxu0 0.0
    %689 = vmatpush1.msra.mxu0 0.0
    %690 = vmatprep.subr.mxu0 0.0
    %691 = vmatpush1.msra.mxu0 0.0
    %692 = vmatprep.subr.mxu0 0.0
    %693 = vmatpush1.msra.mxu0 0.0
    %694 = vmatprep.subr.mxu0 0.0
    %695 = vmatpush1.msra.mxu0 %v52
    %696 = vmatprep.subr.mxu0 0.0
    %697 = vmatpush1.msra.mxu0 %v51
    %698 = vmatprep.subr.mxu0 0.0
    %699 = vmatpush1.msra.mxu0 %v50
    %700 = vmatprep.subr.mxu0 0.0
    %701 = vmatpush1.msra.mxu0 %v49
    %702 = vmatprep.subr.mxu0 0.0
    %703 = vmatpush2.msra.mxu0 0.0
    %704 = vmatprep.subr.mxu0 0.0
    %705 = vmatpush2.msra.mxu0 0.0
    %706 = vmatprep.subr.mxu0 0.0
    %707 = vmatpush2.msra.mxu0 0.0
    %708 = vmatprep.subr.mxu0 0.0
    %709 = vmatpush2.msra.mxu0 0.0
    %710 = vmatprep.subr.mxu0 0.0
    %711 = vmatpush2.msra.mxu0 0.0
    %712 = vmatprep.subr.mxu0 0.0
    %713 = vmatpush2.msra.mxu0 0.0
    %714 = vmatprep.subr.mxu0 0.0
    %715 = vmatpush2.msra.mxu0 0.0
    %716 = vmatprep.subr.mxu0 0.0
    %717 = vmatpush2.msra.mxu0 0.0
    %718 = vmatprep.subr.mxu0 0.0
    %719 = vmatpush2.msra.mxu0 0.0
    %720 = vmatprep.subr.mxu0 0.0
    %721 = vmatpush2.msra.mxu0 0.0
    %722 = vmatprep.subr.mxu0 0.0
    %723 = vmatpush2.msra.mxu0 0.0
    %724 = vmatprep.subr.mxu0 0.0
    %725 = vmatpush2.msra.mxu0 0.0
    %726 = vmatprep.subr.mxu0 0.0
    %727 = vmatpush2.msra.mxu0 0.0
    %728 = vmatprep.subr.mxu0 0.0
    %729 = vmatpush2.msra.mxu0 0.0
    %730 = vmatprep.subr.mxu0 0.0
    %731 = vmatpush2.msra.mxu0 0.0
    %732 = vmatprep.subr.mxu0 0.0
    %733 = vmatpush2.msra.mxu0 0.0
    %734 = vmatprep.mubr.f32.mxu0 0.0
    %735 = vmatmul.mubr.f32.gmra.mxu0 %v668
    %v736 = vpop.f32.mrf.mxu0
    %v737 = vadd.f32 0.0, %v736
    %v738 = vpop.f32.mrf.mxu0
    %739 = vdwg.mxu0
    %v740 = vadd.f32 %v664, %v737
    %v741 = vxor.u32 %v740, 2147483648
    %v742 = vmul.f32 %v741, 1.442695
    %v743 = vpow.pop %v742
    %v744 = vadd.f32 %v743, 1.0
    %v745 = vrcp.pop %v744
    %v746 = vmul.f32 1.0, %v745
    %v747 = vtanh.pop %v740
    %v748 = vmul.f32 %v746, %v656
    %750 = vrot.lane.b32.xlu0 %v747, 32
    %v751 = vpop.permute.xlu0 %750
    %v753 = vmul.f32 %v746, %v751
    %755 = vrot.lane.b32.xlu0 %v753, 32
    %v756 = vpop.permute.xlu0 %755
    %v758 = vadd.f32 %v748, %v756
    %v759 = vtanh.pop %v758
    %761 = vrot.lane.b32.xlu0 %v759, 32
    %v762 = vpop.permute.xlu0 %761
    %v764 = vmul.f32 %v746, %v762
    %s765 = scalar_lea.vmem %s0, 56
    %v766 = vld [vmem:[%s765] sm:$0xff]
    %768 = vrot.lane.b32.xlu0 %v764, 64
    %v769 = vpop.permute.xlu0 %768
    %v770 = vsel %vm54, %v769, 0
    %772 = vmatprep.subr.mxu0 0.0
    %773 = vmatpush1.msra.mxu0 0.0
    %774 = vmatprep.subr.mxu0 0.0
    %775 = vmatpush1.msra.mxu0 0.0
    %776 = vmatprep.subr.mxu0 0.0
    %777 = vmatpush1.msra.mxu0 0.0
    %778 = vmatprep.subr.mxu0 0.0
    %779 = vmatpush1.msra.mxu0 0.0
    %780 = vmatprep.subr.mxu0 0.0
    %781 = vmatpush1.msra.mxu0 0.0
    %782 = vmatprep.subr.mxu0 0.0
    %783 = vmatpush1.msra.mxu0 0.0
    %784 = vmatprep.subr.mxu0 0.0
    %785 = vmatpush1.msra.mxu0 0.0
    %786 = vmatprep.subr.mxu0 0.0
    %787 = vmatpush1.msra.mxu0 0.0
    %788 = vmatprep.subr.mxu0 0.0
    %789 = vmatpush1.msra.mxu0 0.0
    %790 = vmatprep.subr.mxu0 0.0
    %791 = vmatpush1.msra.mxu0 0.0
    %792 = vmatprep.subr.mxu0 0.0
    %793 = vmatpush1.msra.mxu0 0.0
    %794 = vmatprep.subr.mxu0 0.0
    %795 = vmatpush1.msra.mxu0 0.0
    %796 = vmatprep.subr.mxu0 0.0
    %797 = vmatpush1.msra.mxu0 %v52
    %798 = vmatprep.subr.mxu0 0.0
    %799 = vmatpush1.msra.mxu0 %v51
    %800 = vmatprep.subr.mxu0 0.0
    %801 = vmatpush1.msra.mxu0 %v50
    %802 = vmatprep.subr.mxu0 0.0
    %803 = vmatpush1.msra.mxu0 %v49
    %804 = vmatprep.subr.mxu0 0.0
    %805 = vmatpush2.msra.mxu0 0.0
    %806 = vmatprep.subr.mxu0 0.0
    %807 = vmatpush2.msra.mxu0 0.0
    %808 = vmatprep.subr.mxu0 0.0
    %809 = vmatpush2.msra.mxu0 0.0
    %810 = vmatprep.subr.mxu0 0.0
    %811 = vmatpush2.msra.mxu0 0.0
    %812 = vmatprep.subr.mxu0 0.0
    %813 = vmatpush2.msra.mxu0 0.0
    %814 = vmatprep.subr.mxu0 0.0
    %815 = vmatpush2.msra.mxu0 0.0
    %816 = vmatprep.subr.mxu0 0.0
    %817 = vmatpush2.msra.mxu0 0.0
    %818 = vmatprep.subr.mxu0 0.0
    %819 = vmatpush2.msra.mxu0 0.0
    %820 = vmatprep.subr.mxu0 0.0
    %821 = vmatpush2.msra.mxu0 0.0
    %822 = vmatprep.subr.mxu0 0.0
    %823 = vmatpush2.msra.mxu0 0.0
    %824 = vmatprep.subr.mxu0 0.0
    %825 = vmatpush2.msra.mxu0 0.0
    %826 = vmatprep.subr.mxu0 0.0
    %827 = vmatpush2.msra.mxu0 0.0
    %828 = vmatprep.subr.mxu0 0.0
    %829 = vmatpush2.msra.mxu0 0.0
    %830 = vmatprep.subr.mxu0 0.0
    %831 = vmatpush2.msra.mxu0 0.0
    %832 = vmatprep.subr.mxu0 0.0
    %833 = vmatpush2.msra.mxu0 0.0
    %834 = vmatprep.subr.mxu0 0.0
    %835 = vmatpush2.msra.mxu0 0.0
    %836 = vmatprep.mubr.f32.mxu0 0.0
    %837 = vmatmul.mubr.f32.gmra.mxu0 %v770
    %v838 = vpop.f32.mrf.mxu0
    %v839 = vadd.f32 0.0, %v838
    %v840 = vpop.f32.mrf.mxu0
    %841 = vdwg.mxu0
    %v842 = vadd.f32 %v766, %v839
    %v843 = vxor.u32 %v842, 2147483648
    %v844 = vmul.f32 %v843, 1.442695
    %v845 = vpow.pop %v844
    %v846 = vadd.f32 %v845, 1.0
    %v847 = vrcp.pop %v846
    %v848 = vmul.f32 1.0, %v847
    %v849 = vtanh.pop %v842
    %v850 = vmul.f32 %v848, %v758
    %852 = vrot.lane.b32.xlu0 %v849, 32
    %v853 = vpop.permute.xlu0 %852
    %v855 = vmul.f32 %v848, %v853
    %857 = vrot.lane.b32.xlu0 %v855, 32
    %v858 = vpop.permute.xlu0 %857
    %v860 = vadd.f32 %v850, %v858
    %v861 = vtanh.pop %v860
    %863 = vrot.lane.b32.xlu0 %v861, 32
    %v864 = vpop.permute.xlu0 %863
    %v866 = vmul.f32 %v848, %v864
    %v867 = vld [vmem:[%s3] sm:$0xff]
    %v868 = vld [vmem:[%s3 + $0x8] sm:$0xff]
    %v869 = vld [vmem:[%s3 + $0x10] sm:$0xff]
    %v870 = vld [vmem:[%s3 + $0x18] sm:$0xff]
    %v871 = vld [vmem:[%s4] sm:$0x1]
    %v873 = vlaneseq
    %v874 = vshrl.u32 %v873, 7
    %v875 = vsub.s32 0, %v874
    %v876 = vrot.slane %v871, %v875
    %879 = vrot.lane.b32.xlu0 %v866, 64
    %v880 = vpop.permute.xlu0 %879
    %v881 = vsel %vm54, %v880, 0
    %883 = vmatprep.subr.mxu0 0.0
    %884 = vmatpush1.msra.mxu0 0.0
    %885 = vmatprep.subr.mxu0 0.0
    %886 = vmatpush1.msra.mxu0 0.0
    %887 = vmatprep.subr.mxu0 0.0
    %888 = vmatpush1.msra.mxu0 0.0
    %889 = vmatprep.subr.mxu0 0.0
    %890 = vmatpush1.msra.mxu0 0.0
    %891 = vmatprep.subr.mxu0 0.0
    %892 = vmatpush1.msra.mxu0 0.0
    %893 = vmatprep.subr.mxu0 0.0
    %894 = vmatpush1.msra.mxu0 0.0
    %895 = vmatprep.subr.mxu0 0.0
    %896 = vmatpush1.msra.mxu0 0.0
    %897 = vmatprep.subr.mxu0 0.0
    %898 = vmatpush1.msra.mxu0 0.0
    %899 = vmatprep.subr.mxu0 0.0
    %900 = vmatpush1.msra.mxu0 0.0
    %901 = vmatprep.subr.mxu0 0.0
    %902 = vmatpush1.msra.mxu0 0.0
    %903 = vmatprep.subr.mxu0 0.0
    %904 = vmatpush1.msra.mxu0 0.0
    %905 = vmatprep.subr.mxu0 0.0
    %906 = vmatpush1.msra.mxu0 0.0
    %907 = vmatprep.subr.mxu0 0.0
    %908 = vmatpush1.msra.mxu0 %v870
    %909 = vmatprep.subr.mxu0 0.0
    %910 = vmatpush1.msra.mxu0 %v869
    %911 = vmatprep.subr.mxu0 0.0
    %912 = vmatpush1.msra.mxu0 %v868
    %913 = vmatprep.subr.mxu0 0.0
    %914 = vmatpush1.msra.mxu0 %v867
    %915 = vmatprep.subr.mxu0 0.0
    %916 = vmatpush2.msra.mxu0 0.0
    %917 = vmatprep.subr.mxu0 0.0
    %918 = vmatpush2.msra.mxu0 0.0
    %919 = vmatprep.subr.mxu0 0.0
    %920 = vmatpush2.msra.mxu0 0.0
    %921 = vmatprep.subr.mxu0 0.0
    %922 = vmatpush2.msra.mxu0 0.0
    %923 = vmatprep.subr.mxu0 0.0
    %924 = vmatpush2.msra.mxu0 0.0
    %925 = vmatprep.subr.mxu0 0.0
    %926 = vmatpush2.msra.mxu0 0.0
    %927 = vmatprep.subr.mxu0 0.0
    %928 = vmatpush2.msra.mxu0 0.0
    %929 = vmatprep.subr.mxu0 0.0
    %930 = vmatpush2.msra.mxu0 0.0
    %931 = vmatprep.subr.mxu0 0.0
    %932 = vmatpush2.msra.mxu0 0.0
    %933 = vmatprep.subr.mxu0 0.0
    %934 = vmatpush2.msra.mxu0 0.0
    %935 = vmatprep.subr.mxu0 0.0
    %936 = vmatpush2.msra.mxu0 0.0
    %937 = vmatprep.subr.mxu0 0.0
    %938 = vmatpush2.msra.mxu0 0.0
    %939 = vmatprep.subr.mxu0 0.0
    %940 = vmatpush2.msra.mxu0 0.0
    %941 = vmatprep.subr.mxu0 0.0
    %942 = vmatpush2.msra.mxu0 0.0
    %943 = vmatprep.subr.mxu0 0.0
    %944 = vmatpush2.msra.mxu0 0.0
    %945 = vmatprep.subr.mxu0 0.0
    %946 = vmatpush2.msra.mxu0 0.0
    %947 = vmatprep.mubr.f32.mxu0 0.0
    %948 = vmatmul.mubr.f32.gmra.mxu0 %v881
    %v949 = vpop.f32.mrf.mxu0
    %v950 = vadd.f32 %v876, %v949
    %v951 = vpop.f32.mrf.mxu0
    %952 = vdwg.mxu0
    %v953 = vmax.f32 %v950, 0.0
    %v954 = vld [vmem:[#allocation2] sm:$0xff]
    %v955 = vld [vmem:[#allocation2 + $0x8] sm:$0xff]
    %v956 = vld [vmem:[%s1] sm:$0xff]
    %v957 = vld [vmem:[%s6] sm:$0xf]
    %vm958 = vcmask 31744
    %v960 = vsel %vm958, %v956, 0
    %vm962 = vcmask 1043456
    %v964 = vsel %vm962, %v957, 0
    %966 = vmatprep.subr.mxu0 0.0
    %967 = vmatpush1.msra.mxu0 0.0
    %968 = vmatprep.subr.mxu0 0.0
    %969 = vmatpush1.msra.mxu0 0.0
    %970 = vmatprep.subr.mxu0 0.0
    %971 = vmatpush1.msra.mxu0 0.0
    %972 = vmatprep.subr.mxu0 0.0
    %973 = vmatpush1.msra.mxu0 0.0
    %974 = vmatprep.subr.mxu0 0.0
    %975 = vmatpush1.msra.mxu0 0.0
    %976 = vmatprep.subr.mxu0 0.0
    %977 = vmatpush1.msra.mxu0 0.0
    %978 = vmatprep.subr.mxu0 0.0
    %979 = vmatpush1.msra.mxu0 0.0
    %980 = vmatprep.subr.mxu0 0.0
    %981 = vmatpush1.msra.mxu0 0.0
    %982 = vmatprep.subr.mxu0 0.0
    %983 = vmatpush1.msra.mxu0 0.0
    %984 = vmatprep.subr.mxu0 0.0
    %985 = vmatpush1.msra.mxu0 0.0
    %986 = vmatprep.subr.mxu0 0.0
    %987 = vmatpush1.msra.mxu0 0.0
    %988 = vmatprep.subr.mxu0 0.0
    %989 = vmatpush1.msra.mxu0 0.0
    %990 = vmatprep.subr.mxu0 0.0
    %991 = vmatpush1.msra.mxu0 0.0
    %992 = vmatprep.subr.mxu0 0.0
    %993 = vmatpush1.msra.mxu0 0.0
    %994 = vmatprep.subr.mxu0 0.0
    %995 = vmatpush1.msra.mxu0 0.0
    %996 = vmatprep.subr.mxu0 0.0
    %997 = vmatpush1.msra.mxu0 %v964
    %998 = vmatprep.subr.mxu0 0.0
    %999 = vmatpush2.msra.mxu0 0.0
    %1000 = vmatprep.subr.mxu0 0.0
    %1001 = vmatpush2.msra.mxu0 0.0
    %1002 = vmatprep.subr.mxu0 0.0
    %1003 = vmatpush2.msra.mxu0 0.0
    %1004 = vmatprep.subr.mxu0 0.0
    %1005 = vmatpush2.msra.mxu0 0.0
    %1006 = vmatprep.subr.mxu0 0.0
    %1007 = vmatpush2.msra.mxu0 0.0
    %1008 = vmatprep.subr.mxu0 0.0
    %1009 = vmatpush2.msra.mxu0 0.0
    %1010 = vmatprep.subr.mxu0 0.0
    %1011 = vmatpush2.msra.mxu0 0.0
    %1012 = vmatprep.subr.mxu0 0.0
    %1013 = vmatpush2.msra.mxu0 0.0
    %1014 = vmatprep.subr.mxu0 0.0
    %1015 = vmatpush2.msra.mxu0 0.0
    %1016 = vmatprep.subr.mxu0 0.0
    %1017 = vmatpush2.msra.mxu0 0.0
    %1018 = vmatprep.subr.mxu0 0.0
    %1019 = vmatpush2.msra.mxu0 0.0
    %1020 = vmatprep.subr.mxu0 0.0
    %1021 = vmatpush2.msra.mxu0 0.0
    %1022 = vmatprep.subr.mxu0 0.0
    %1023 = vmatpush2.msra.mxu0 0.0
    %1024 = vmatprep.subr.mxu0 0.0
    %1025 = vmatpush2.msra.mxu0 0.0
    %1026 = vmatprep.subr.mxu0 0.0
    %1027 = vmatpush2.msra.mxu0 0.0
    %1028 = vmatprep.subr.mxu0 0.0
    %1029 = vmatpush2.msra.mxu0 0.0
    %1030 = vmatprep.mubr.f32.mxu0 0.0
    %1031 = vmatmul.mubr.f32.gmra.mxu0 %v960
    %v1032 = vpop.f32.mrf.mxu0
    %v1033 = vadd.f32 0.0, %v1032
    %v1034 = vpop.f32.mrf.mxu0
    %1035 = vdwg.mxu0
    %vm1036 = vcmask 130048
    %v1038 = vsel %vm1036, %v953, 0
    %1040 = vmatprep.subr.mxu0 0.0
    %1041 = vmatpush1.msra.mxu0 0.0
    %1042 = vmatprep.subr.mxu0 0.0
    %1043 = vmatpush1.msra.mxu0 0.0
    %1044 = vmatprep.subr.mxu0 0.0
    %1045 = vmatpush1.msra.mxu0 0.0
    %1046 = vmatprep.subr.mxu0 0.0
    %1047 = vmatpush1.msra.mxu0 0.0
    %1048 = vmatprep.subr.mxu0 0.0
    %1049 = vmatpush1.msra.mxu0 0.0
    %1050 = vmatprep.subr.mxu0 0.0
    %1051 = vmatpush1.msra.mxu0 0.0
    %1052 = vmatprep.subr.mxu0 0.0
    %1053 = vmatpush1.msra.mxu0 0.0
    %1054 = vmatprep.subr.mxu0 0.0
    %1055 = vmatpush1.msra.mxu0 0.0
    %1056 = vmatprep.subr.mxu0 0.0
    %1057 = vmatpush1.msra.mxu0 0.0
    %1058 = vmatprep.subr.mxu0 0.0
    %1059 = vmatpush1.msra.mxu0 0.0
    %1060 = vmatprep.subr.mxu0 0.0
    %1061 = vmatpush1.msra.mxu0 0.0
    %1062 = vmatprep.subr.mxu0 0.0
    %1063 = vmatpush1.msra.mxu0 0.0
    %1064 = vmatprep.subr.mxu0 0.0
    %1065 = vmatpush1.msra.mxu0 0.0
    %1066 = vmatprep.subr.mxu0 0.0
    %1067 = vmatpush1.msra.mxu0 0.0
    %1068 = vmatprep.subr.mxu0 0.0
    %1069 = vmatpush1.msra.mxu0 %v955
    %1070 = vmatprep.subr.mxu0 0.0
    %1071 = vmatpush1.msra.mxu0 %v954
    %1072 = vmatprep.subr.mxu0 0.0
    %1073 = vmatpush2.msra.mxu0 0.0
    %1074 = vmatprep.subr.mxu0 0.0
    %1075 = vmatpush2.msra.mxu0 0.0
    %1076 = vmatprep.subr.mxu0 0.0
    %1077 = vmatpush2.msra.mxu0 0.0
    %1078 = vmatprep.subr.mxu0 0.0
    %1079 = vmatpush2.msra.mxu0 0.0
    %1080 = vmatprep.subr.mxu0 0.0
    %1081 = vmatpush2.msra.mxu0 0.0
    %1082 = vmatprep.subr.mxu0 0.0
    %1083 = vmatpush2.msra.mxu0 0.0
    %1084 = vmatprep.subr.mxu0 0.0
    %1085 = vmatpush2.msra.mxu0 0.0
    %1086 = vmatprep.subr.mxu0 0.0
    %1087 = vmatpush2.msra.mxu0 0.0
    %1088 = vmatprep.subr.mxu0 0.0
    %1089 = vmatpush2.msra.mxu0 0.0
    %1090 = vmatprep.subr.mxu0 0.0
    %1091 = vmatpush2.msra.mxu0 0.0
    %1092 = vmatprep.subr.mxu0 0.0
    %1093 = vmatpush2.msra.mxu0 0.0
    %1094 = vmatprep.subr.mxu0 0.0
    %1095 = vmatpush2.msra.mxu0 0.0
    %1096 = vmatprep.subr.mxu0 0.0
    %1097 = vmatpush2.msra.mxu0 0.0
    %1098 = vmatprep.subr.mxu0 0.0
    %1099 = vmatpush2.msra.mxu0 0.0
    %1100 = vmatprep.subr.mxu0 0.0
    %1101 = vmatpush2.msra.mxu0 0.0
    %1102 = vmatprep.subr.mxu0 0.0
    %1103 = vmatpush2.msra.mxu0 0.0
    %1104 = vmatprep.mubr.f32.mxu0 0.0
    %1105 = vmatmul.mubr.f32.gmra.mxu0 %v1038
    %v1106 = vpop.f32.mrf.mxu0
    %v1107 = vadd.f32 %v1033, %v1106
    %v1108 = vpop.f32.mrf.mxu0
    %1109 = vdwg.mxu0
    %v1110 = vld [vmem:[%s7] sm:$0x1]
    %v1112 = vlaneseq
    %v1113 = vshrl.u32 %v1112, 7
    %v1114 = vsub.s32 0, %v1113
    %v1115 = vrot.slane %v1110, %v1114
    %v1117 = vadd.f32 %v1107, %v1115
    %v1118 = vmax.f32 %v1117, 0.0
    %v1119 = vld [vmem:[%s8] sm:$0xff]
    %v1120 = vld [vmem:[%s8 + $0x8] sm:$0xff]
    %v1121 = vld [vmem:[%s8 + $0x10] sm:$0xff]
    %v1122 = vld [vmem:[%s8 + $0x18] sm:$0xff]
    %v1123 = vld [vmem:[%s9] sm:$0x1]
    %v1125 = vlaneseq
    %v1126 = vshrl.u32 %v1125, 7
    %v1127 = vsub.s32 0, %v1126
    %v1128 = vrot.slane %v1123, %v1127
    %v1131 = vsel %vm54, %v1118, 0
    %1133 = vmatprep.subr.mxu0 0.0
    %1134 = vmatpush1.msra.mxu0 0.0
    %1135 = vmatprep.subr.mxu0 0.0
    %1136 = vmatpush1.msra.mxu0 0.0
    %1137 = vmatprep.subr.mxu0 0.0
    %1138 = vmatpush1.msra.mxu0 0.0
    %1139 = vmatprep.subr.mxu0 0.0
    %1140 = vmatpush1.msra.mxu0 0.0
    %1141 = vmatprep.subr.mxu0 0.0
    %1142 = vmatpush1.msra.mxu0 0.0
    %1143 = vmatprep.subr.mxu0 0.0
    %1144 = vmatpush1.msra.mxu0 0.0
    %1145 = vmatprep.subr.mxu0 0.0
    %1146 = vmatpush1.msra.mxu0 0.0
    %1147 = vmatprep.subr.mxu0 0.0
    %1148 = vmatpush1.msra.mxu0 0.0
    %1149 = vmatprep.subr.mxu0 0.0
    %1150 = vmatpush1.msra.mxu0 0.0
    %1151 = vmatprep.subr.mxu0 0.0
    %1152 = vmatpush1.msra.mxu0 0.0
    %1153 = vmatprep.subr.mxu0 0.0
    %1154 = vmatpush1.msra.mxu0 0.0
    %1155 = vmatprep.subr.mxu0 0.0
    %1156 = vmatpush1.msra.mxu0 0.0
    %1157 = vmatprep.subr.mxu0 0.0
    %1158 = vmatpush1.msra.mxu0 %v1122
    %1159 = vmatprep.subr.mxu0 0.0
    %1160 = vmatpush1.msra.mxu0 %v1121
    %1161 = vmatprep.subr.mxu0 0.0
    %1162 = vmatpush1.msra.mxu0 %v1120
    %1163 = vmatprep.subr.mxu0 0.0
    %1164 = vmatpush1.msra.mxu0 %v1119
    %1165 = vmatprep.subr.mxu0 0.0
    %1166 = vmatpush2.msra.mxu0 0.0
    %1167 = vmatprep.subr.mxu0 0.0
    %1168 = vmatpush2.msra.mxu0 0.0
    %1169 = vmatprep.subr.mxu0 0.0
    %1170 = vmatpush2.msra.mxu0 0.0
    %1171 = vmatprep.subr.mxu0 0.0
    %1172 = vmatpush2.msra.mxu0 0.0
    %1173 = vmatprep.subr.mxu0 0.0
    %1174 = vmatpush2.msra.mxu0 0.0
    %1175 = vmatprep.subr.mxu0 0.0
    %1176 = vmatpush2.msra.mxu0 0.0
    %1177 = vmatprep.subr.mxu0 0.0
    %1178 = vmatpush2.msra.mxu0 0.0
    %1179 = vmatprep.subr.mxu0 0.0
    %1180 = vmatpush2.msra.mxu0 0.0
    %1181 = vmatprep.subr.mxu0 0.0
    %1182 = vmatpush2.msra.mxu0 0.0
    %1183 = vmatprep.subr.mxu0 0.0
    %1184 = vmatpush2.msra.mxu0 0.0
    %1185 = vmatprep.subr.mxu0 0.0
    %1186 = vmatpush2.msra.mxu0 0.0
    %1187 = vmatprep.subr.mxu0 0.0
    %1188 = vmatpush2.msra.mxu0 0.0
    %1189 = vmatprep.subr.mxu0 0.0
    %1190 = vmatpush2.msra.mxu0 0.0
    %1191 = vmatprep.subr.mxu0 0.0
    %1192 = vmatpush2.msra.mxu0 0.0
    %1193 = vmatprep.subr.mxu0 0.0
    %1194 = vmatpush2.msra.mxu0 0.0
    %1195 = vmatprep.subr.mxu0 0.0
    %1196 = vmatpush2.msra.mxu0 0.0
    %1197 = vmatprep.mubr.f32.mxu0 0.0
    %1198 = vmatmul.mubr.f32.gmra.mxu0 %v1131
    %v1199 = vpop.f32.mrf.mxu0
    %v1200 = vadd.f32 %v1128, %v1199
    %v1201 = vpop.f32.mrf.mxu0
    %1202 = vdwg.mxu0
    %1203 = vst.msk [vmem:[%s10] sm:$0xff] %vm958, %v1200
    // Predicated region
    $region46: #{tpu_custom_call.1} parent=1 // pred_check
      _
    $region47: #{tpu_custom_call.1} parent=1 // pred_check_branch
      %1205 = sbr.rel (0) target = $region49
    $region48: #{tpu_custom_call.1} parent=1 // pred_region
      _
    $region49: #{tpu_custom_call.1} parent=1 // pred_fallthru
      _
    // Predicated region
    $region50: #{tpu_custom_call.1} parent=1 // pred_check
      _
    $region51: #{tpu_custom_call.1} parent=1 // pred_check_branch
      %1207 = sbr.rel (0) target = $region53
    $region52: #{tpu_custom_call.1} parent=1 // pred_region
      _
    $region53: #{tpu_custom_call.1} parent=1 // pred_fallthru
      _
    %1208 = vsyncpa [#allocation3], 1

</llo_original>
